<compile_context>
chip_gen: v5e
topology: v5e:2x2
jax: 0.10.0
libtpu: 0.0.40
codegen_flags: <defaults>
</compile_context>

<pallas_src>
import functools

import jax
import jax.numpy as jnp
from jax.experimental import pallas as pl
from jax.experimental.pallas import tpu as pltpu

LN_EPS = 1e-5
# bf16 MXU operands (native on v6e/v7x, halves weight VMEM); accumulation and
# LayerNorm stay fp32.  Use jnp.float32 here for exact fp32 reference parity.
DOT_DTYPE = jnp.bfloat16


def _round_up(x, m):
    return ((x + m - 1) // m) * m


def _vmem_limit_bytes():
    """Generation-aware scoped-VMEM limit: ~75% of physical VMEM,
    i.e. ~96 MiB on v5e/v6e (128 MiB physical) and ~48 MiB on v7x (64 MiB)."""
    cap = 64 * 1024 * 1024
    try:
        info = pltpu.get_tpu_info()
        cap = int(getattr(info, "vmem_capacity_bytes", cap)) or cap
    except Exception:
        pass
    return int(min(cap * 3 // 4, 96 * 1024 * 1024))


VMEM_LIMIT_BYTES = _vmem_limit_bytes()


def _pick_row_tile(n_rows, bytes_per_row, vmem_budget, cap):
    """Largest row tile fitting the VMEM budget (multiple of 8, capped)."""
    rows = int(vmem_budget // max(int(bytes_per_row), 1))
    rows = max(8, min(rows, int(cap)))
    if rows >= n_rows:
        return n_rows                      # single full block (always legal)
    return max(8, (rows // 8) * 8)         # partial last block handled by Pallas


def _finish_block(h_pre, res, w2, b2, gamma, beta):
    """LayerNorm(relu(h_pre) @ W2 + b2 + res).  Dropout is identity (eval)."""
    h = jnp.maximum(h_pre, 0.0).astype(DOT_DTYPE)
    y = jnp.dot(h, w2, preferred_element_type=jnp.float32) + b2 + res
    mean = jnp.mean(y, axis=-1, keepdims=True)
    centered = y - mean
    var = jnp.mean(centered * centered, axis=-1, keepdims=True)
    inv = jax.lax.rsqrt(var + LN_EPS)
    return centered * inv * gamma + beta


# ----------------------------------------------------------------------------
# Feature projection: fused ResidualBlock applied row-wise to (N, r).
# ----------------------------------------------------------------------------
def residual_block_kernel(x_ref, w1_ref, b1_ref, w2_ref, b2_ref,
                          wr_ref, br_ref, g_ref, bt_ref, out_ref):
    x = x_ref[...].astype(DOT_DTYPE)
    h = jnp.dot(x, w1_ref[...], preferred_element_type=jnp.float32) + b1_ref[...]
    res = jnp.dot(x, wr_ref[...], preferred_element_type=jnp.float32) + br_ref[...]
    out_ref[...] = _finish_block(h, res, w2_ref[...], b2_ref[...],
                                 g_ref[...], bt_ref[...])


def residual_block(x, params, *, max_tile_rows=8192):
    """Apply the fused ResidualBlock kernel to a 2-D input (N, in_dim)."""
    w1, b1, w2, b2, wr, br, gamma, beta = params
    n, in_dim = x.shape
    hidden = w1.shape[1]
    out_dim = w2.shape[1]
    # Double-buffered f32 in/out tiles + f32 intermediates (h, res, y, ln).
    bytes_per_row = 4 * (2 * in_dim + 2 * out_dim + hidden + 3 * out_dim)
    tile_n = _pick_row_tile(n, bytes_per_row, VMEM_LIMIT_BYTES // 2,
                            max_tile_rows)
    grid = (pl.cdiv(n, tile_n),)

    def const(arr):
        return pl.BlockSpec(arr.shape, lambda i: (0, 0))

    return pl.pallas_call(
        residual_block_kernel,
        out_shape=jax.ShapeDtypeStruct((n, out_dim), jnp.float32),
        grid=grid,
        in_specs=[pl.BlockSpec((tile_n, in_dim), lambda i: (i, 0)),
                  const(w1), const(b1), const(w2), const(b2),
                  const(wr), const(br), const(gamma), const(beta)],
        out_specs=pl.BlockSpec((tile_n, out_dim), lambda i: (i, 0)),
        compiler_params=pltpu.CompilerParams(
            dimension_semantics=("parallel",),
            vmem_limit_bytes=VMEM_LIMIT_BYTES),
    )(x, w1, b1, w2, b2, wr, br, gamma, beta)


# ----------------------------------------------------------------------------
# Encoder stack: first layer (folded concat) + streamed other layers.
# grid = (batch_tiles [parallel], layer_index [arbitrary]).
# ----------------------------------------------------------------------------
def encoder_stack_kernel(*refs, has_others):
    if has_others:
        (x_ref, attr_ref, cov_ref,
         w1x_ref, w1a_ref, w1c_ref, b1_ref,
         wrx_ref, wra_ref, wrc_ref, br_ref,
         w2_ref, b2_ref, g_ref, bt_ref,
         ow1_ref, ob1_ref, ow2_ref, ob2_ref,
         owr_ref, obr_ref, og_ref, obt_ref,
         out_ref, e_ref) = refs
    else:
        (x_ref, attr_ref, cov_ref,
         w1x_ref, w1a_ref, w1c_ref, b1_ref,
         wrx_ref, wra_ref, wrc_ref, br_ref,
         w2_ref, b2_ref, g_ref, bt_ref,
         out_ref, e_ref) = refs

    layer = pl.program_id(1)
    n_layers = pl.num_programs(1)

    @pl.when(layer == 0)
    def _first_layer():
        # e0 = concat([x, attr, cov_flat]) @ W + b, folded into partial matmuls
        # (the attribute column is a rank-1 VPU broadcast).
        xb = x_ref[...].astype(DOT_DTYPE)
        cb = cov_ref[...].astype(DOT_DTYPE)
        a = attr_ref[...]                                   # (TILE_B, 1) fp32
        h = (jnp.dot(xb, w1x_ref[...], preferred_element_type=jnp.float32)
             + jnp.dot(cb, w1c_ref[...], preferred_element_type=jnp.float32)
             + a * w1a_ref[...].astype(jnp.float32)
             + b1_ref[...])
        res = (jnp.dot(xb, wrx_ref[...], preferred_element_type=jnp.float32)
               + jnp.dot(cb, wrc_ref[...], preferred_element_type=jnp.float32)
               + a * wra_ref[...].astype(jnp.float32)
               + br_ref[...])
        e_ref[...] = _finish_block(h, res, w2_ref[...], b2_ref[...],
                                   g_ref[...], bt_ref[...])

    if has_others:
        @pl.when(layer > 0)
        def _other_layer():
            # Per-layer weight block streamed in by the BlockSpec pipeline.
            eb = e_ref[...].astype(DOT_DTYPE)
            h = jnp.dot(eb, ow1_ref[0],
                        preferred_element_type=jnp.float32) + ob1_ref[0]
            res = jnp.dot(eb, owr_ref[0],
                          preferred_element_type=jnp.float32) + obr_ref[0]
            e_ref[...] = _finish_block(h, res, ow2_ref[0], ob2_ref[0],
                                       og_ref[0], obt_ref[0])

    @pl.when(layer == n_layers - 1)
    def _write_out():
        out_ref[...] = e_ref[...]


# ----------------------------------------------------------------------------
# Parameter init (PyTorch nn.Linear / nn.LayerNorm semantics).
# ----------------------------------------------------------------------------
def init_residual_block(key, in_dim, hidden_dim, out_dim):
    """Returns (w1, b1, w2, b2, wr, br, gamma, beta).  Matmul weights are
    stored transposed as (in, out) in DOT_DTYPE; biases/LN params stay fp32."""
    k = jax.random.split(key, 6)

    def lin(kw, kb, fan_in, fan_out):
        bound = 1.0 / jnp.sqrt(jnp.float32(fan_in))
        w = jax.random.uniform(kw, (fan_in, fan_out), jnp.float32, -bound, bound)
        b = jax.random.uniform(kb, (1, fan_out), jnp.float32, -bound, bound)
        return w, b

    w1, b1 = lin(k[0], k[1], in_dim, hidden_dim)
    w2, b2 = lin(k[2], k[3], hidden_dim, out_dim)
    wr, br = lin(k[4], k[5], in_dim, out_dim)
    gamma = jnp.ones((1, out_dim), jnp.float32)
    beta = jnp.zeros((1, out_dim), jnp.float32)
    return (w1.astype(DOT_DTYPE), b1, w2.astype(DOT_DTYPE), b2,
            wr.astype(DOT_DTYPE), br, gamma, beta)


class EncoderPallas:
    def __init__(self, key, layer_num, hidden_dim, r, r_hat, L, H,
                 feature_projection_hidden, max_tile_batch=512):
        self.layer_num = layer_num
        self.hidden_dim = hidden_dim
        self.horizon = H
        self.L = L
        self.r_hat = r_hat
        self.max_tile_batch = max_tile_batch

        keys = jax.random.split(key, layer_num + 1)
        self.feature_projection = init_residual_block(
            keys[0], r, feature_projection_hidden, r_hat)

        first_in = L + 1 + (L + H) * r_hat
        (w1, b1, w2, b2, wr, br, g, bt) = init_residual_block(
            keys[1], first_in, hidden_dim, hidden_dim)
        # Row-split the first-layer weights so the concat
        # [x | attributes | covariates_flat] never materializes in HBM.
        self.first = dict(
            w1x=w1[:L], w1a=w1[L:L + 1], w1c=w1[L + 1:], b1=b1,
            wrx=wr[:L], wra=wr[L:L + 1], wrc=wr[L + 1:], br=br,
            w2=w2, b2=b2, gamma=g, beta=bt)

        self.num_other = layer_num - 1
        self.others = None
        if self.num_other > 0:
            params = [init_residual_block(keys[2 + i], hidden_dim, hidden_dim,
                                          hidden_dim)
                      for i in range(self.num_other)]
            stack = lambda j: jnp.stack([p[j] for p in params])
            self.others = dict(
                w1=stack(0), b1=stack(1), w2=stack(2), b2=stack(3),
                wr=stack(4), br=stack(5), gamma=stack(6), beta=stack(7))

    def _encoder_stack(self, x, attributes, cov_flat):
        batch, L = x.shape
        hidden = self.hidden_dim
        cov_dim = cov_flat.shape[1]
        has_others = self.num_other > 0

        # Batch tile from a VMEM budget (leave headroom for streamed per-layer
        # weights, first-layer weights and compiler scratch).
        bytes_per_row = 4 * (2 * (L + 1 + cov_dim) + 2 * hidden + 4 * hidden)
        tile_b = _pick_row_tile(batch, bytes_per_row, VMEM_LIMIT_BYTES // 4,
                                self.max_tile_batch)
        grid = (pl.cdiv(batch, tile_b), self.layer_num)

        def row(last):
            return pl.BlockSpec((tile_b, last), lambda i, l: (i, 0))

        def const(arr):
            return pl.BlockSpec(arr.shape, lambda i, l: (0, 0))

        def per_layer(arr):
            # Streamed per-layer weight block: only ~2 layers of weights are
            # live in VMEM at a time (double-buffered along the layer axis).
            return pl.BlockSpec(
                (1,) + tuple(arr.shape[1:]),
                lambda i, l: (jnp.maximum(l - 1, 0), 0, 0))

        f = self.first
        args = [x, attributes, cov_flat,
                f["w1x"], f["w1a"], f["w1c"], f["b1"],
                f["wrx"], f["wra"], f["wrc"], f["br"],
                f["w2"], f["b2"], f["gamma"], f["beta"]]
        in_specs = [row(L), row(1), row(cov_dim)] + [const(a) for a in args[3:]]

        if has_others:
            o = self.others
            o_args = [o["w1"], o["b1"], o["w2"], o["b2"],
                      o["wr"], o["br"], o["gamma"], o["beta"]]
            args += o_args
            in_specs += [per_layer(a) for a in o_args]

        return pl.pallas_call(
            functools.partial(encoder_stack_kernel, has_others=has_others),
            out_shape=jax.ShapeDtypeStruct((batch, hidden), jnp.float32),
            grid=grid,
            in_specs=in_specs,
            out_specs=pl.BlockSpec((tile_b, hidden), lambda i, l: (i, 0)),
            scratch_shapes=[pltpu.VMEM((tile_b, hidden), jnp.float32)],
            compiler_params=pltpu.CompilerParams(
                dimension_semantics=("parallel", "arbitrary"),
                vmem_limit_bytes=VMEM_LIMIT_BYTES),
        )(*args)

    @functools.partial(jax.jit, static_argnums=0)
    def __call__(self, x, covariates, attributes):
        b, seq, r = covariates.shape
        # Feature projection applied per (batch, time) row with large row tiles.
        cov2d = covariates.reshape(b * seq, r)
        cov_proj = residual_block(cov2d, self.feature_projection)
        cov_proj = cov_proj.reshape(b, seq, self.r_hat)

        covariates_future = cov_proj[:, -self.horizon:, :]
        cov_flat = cov_proj.reshape(b, seq * self.r_hat)   # 'b l r -> b (l r)'

        # Fused encoder stack: first layer (folded concat) + streamed layers.
        e = self._encoder_stack(x, attributes, cov_flat)
        return e, covariates_future
        # TODO(synk): fully fusing the feature projection into the stack kernel
        # would remove the cov_proj HBM round trip and its 3-lane masked
        # stores, but needs an in-kernel (b, s, r_hat)->(b, s*r_hat) lane
        # relayout; kept as a separate kernel for robustness.


if __name__ == "__main__":
    # Small, self-consistent shapes.
    B = 2
    layer_num = 2
    hidden_dim = 32
    r = 4
    r_hat = 3
    L = 8
    H = 4
    feature_projection_hidden = 16

    key = jax.random.PRNGKey(0)
    k_enc, k_x, k_cov, k_attr = jax.random.split(key, 4)

    encoder = EncoderPallas(k_enc, layer_num, hidden_dim, r, r_hat, L, H,
                            feature_projection_hidden)

    x = jax.random.normal(k_x, (B, L), jnp.float32)
    covariates = jax.random.normal(k_cov, (B, L + H, r), jnp.float32)
    attributes = jax.random.normal(k_attr, (B, 1), jnp.float32)

    e, covariates_future = encoder(x, covariates, attributes)
    jax.block_until_ready((e, covariates_future))

    assert e.shape == (B, hidden_dim)
    assert covariates_future.shape == (B, H, r_hat)
    # TODO(synk): nn.Dropout is identity here (eval mode); training parity
    # would use pltpu.prng_seed / prng_random_bits inside the kernels.
    print("KERNEL_OK")
</pallas_src>

<mosaic_0001>
module attributes {stable_mosaic.version = 11 : i64} {
  func.func @residual_block_kernel(%arg0: i32, %arg1: memref<24x4xf32, #tpu.memory_space<vmem>>, %arg2: memref<4x16xbf16, #tpu.memory_space<vmem>>, %arg3: memref<1x16xf32, #tpu.memory_space<vmem>>, %arg4: memref<16x3xbf16, #tpu.memory_space<vmem>>, %arg5: memref<1x3xf32, #tpu.memory_space<vmem>>, %arg6: memref<4x3xbf16, #tpu.memory_space<vmem>>, %arg7: memref<1x3xf32, #tpu.memory_space<vmem>>, %arg8: memref<1x3xf32, #tpu.memory_space<vmem>>, %arg9: memref<1x3xf32, #tpu.memory_space<vmem>>, %arg10: memref<24x3xf32, #tpu.memory_space<vmem>>) attributes {dimension_semantics = [#tpu.dimension_semantics<parallel>], iteration_bounds = array<i64: 1>, scalar_prefetch = 0 : i64, scratch_operands = 0 : i64, tpu.core_type = #tpu.core_type<tc>, window_params = [{transform_indices = @transform_0, window_bounds = array<i64: 24, 4>}, {pipeline_mode = #tpu.pipeline_mode<synchronous>, transform_indices = @transform_1, window_bounds = array<i64: 4, 16>}, {pipeline_mode = #tpu.pipeline_mode<synchronous>, transform_indices = @transform_2, window_bounds = array<i64: 1, 16>}, {pipeline_mode = #tpu.pipeline_mode<synchronous>, transform_indices = @transform_3, window_bounds = array<i64: 16, 3>}, {pipeline_mode = #tpu.pipeline_mode<synchronous>, transform_indices = @transform_4, window_bounds = array<i64: 1, 3>}, {pipeline_mode = #tpu.pipeline_mode<synchronous>, transform_indices = @transform_5, window_bounds = array<i64: 4, 3>}, {pipeline_mode = #tpu.pipeline_mode<synchronous>, transform_indices = @transform_6, window_bounds = array<i64: 1, 3>}, {pipeline_mode = #tpu.pipeline_mode<synchronous>, transform_indices = @transform_7, window_bounds = array<i64: 1, 3>}, {pipeline_mode = #tpu.pipeline_mode<synchronous>, transform_indices = @transform_8, window_bounds = array<i64: 1, 3>}, {transform_indices = @transform_9, window_bounds = array<i64: 24, 3>}]} {
    %c0 = arith.constant 0 : index
    %c0_0 = arith.constant 0 : index
    %0 = vector.load %arg1[%c0, %c0_0] : memref<24x4xf32, #tpu.memory_space<vmem>>, vector<24x4xf32>
    %1 = arith.truncf %0 : vector<24x4xf32> to vector<24x4xbf16>
    %c0_1 = arith.constant 0 : index
    %c0_2 = arith.constant 0 : index
    %2 = vector.load %arg2[%c0_1, %c0_2] : memref<4x16xbf16, #tpu.memory_space<vmem>>, vector<4x16xbf16>
    %cst = arith.constant dense<0.000000e+00> : vector<24x16xf32>
    %3 = tpu.matmul %1, %2, %cst {dimension_numbers = #tpu.dot_dimension_numbers<[1], [0], [0], [1], [0, 0, 1, 1], [], []>} : vector<24x4xbf16>, vector<4x16xbf16>, vector<24x16xf32> -> vector<24x16xf32>
    %c0_3 = arith.constant 0 : index
    %c0_4 = arith.constant 0 : index
    %4 = vector.load %arg3[%c0_3, %c0_4] : memref<1x16xf32, #tpu.memory_space<vmem>>, vector<1x16xf32>
    %5 = vector.broadcast %4 : vector<1x16xf32> to vector<24x16xf32>
    %6 = arith.addf %3, %5 : vector<24x16xf32>
    %c0_5 = arith.constant 0 : index
    %c0_6 = arith.constant 0 : index
    %7 = vector.load %arg6[%c0_5, %c0_6] : memref<4x3xbf16, #tpu.memory_space<vmem>>, vector<4x3xbf16>
    %cst_7 = arith.constant dense<0.000000e+00> : vector<24x3xf32>
    %8 = tpu.matmul %1, %7, %cst_7 {dimension_numbers = #tpu.dot_dimension_numbers<[1], [0], [0], [1], [0, 0, 1, 1], [], []>} : vector<24x4xbf16>, vector<4x3xbf16>, vector<24x3xf32> -> vector<24x3xf32>
    %c0_8 = arith.constant 0 : index
    %c0_9 = arith.constant 0 : index
    %9 = vector.load %arg7[%c0_8, %c0_9] : memref<1x3xf32, #tpu.memory_space<vmem>>, vector<1x3xf32>
    %10 = vector.broadcast %9 : vector<1x3xf32> to vector<24x3xf32>
    %11 = arith.addf %8, %10 : vector<24x3xf32>
    %c0_10 = arith.constant 0 : index
    %c0_11 = arith.constant 0 : index
    %12 = vector.load %arg4[%c0_10, %c0_11] : memref<16x3xbf16, #tpu.memory_space<vmem>>, vector<16x3xbf16>
    %c0_12 = arith.constant 0 : index
    %c0_13 = arith.constant 0 : index
    %13 = vector.load %arg5[%c0_12, %c0_13] : memref<1x3xf32, #tpu.memory_space<vmem>>, vector<1x3xf32>
    %c0_14 = arith.constant 0 : index
    %c0_15 = arith.constant 0 : index
    %14 = vector.load %arg8[%c0_14, %c0_15] : memref<1x3xf32, #tpu.memory_space<vmem>>, vector<1x3xf32>
    %c0_16 = arith.constant 0 : index
    %c0_17 = arith.constant 0 : index
    %15 = vector.load %arg9[%c0_16, %c0_17] : memref<1x3xf32, #tpu.memory_space<vmem>>, vector<1x3xf32>
    %cst_18 = arith.constant 0.000000e+00 : f32
    %16 = vector.broadcast %cst_18 : f32 to vector<24x16xf32>
    %17 = arith.maximumf %6, %16 : vector<24x16xf32>
    %18 = arith.truncf %17 : vector<24x16xf32> to vector<24x16xbf16>
    %cst_19 = arith.constant dense<0.000000e+00> : vector<24x3xf32>
    %19 = tpu.matmul %18, %12, %cst_19 {dimension_numbers = #tpu.dot_dimension_numbers<[1], [0], [0], [1], [0, 0, 1, 1], [], []>} : vector<24x16xbf16>, vector<16x3xbf16>, vector<24x3xf32> -> vector<24x3xf32>
    %20 = vector.broadcast %13 : vector<1x3xf32> to vector<24x3xf32>
    %21 = arith.addf %19, %20 : vector<24x3xf32>
    %22 = arith.addf %21, %11 : vector<24x3xf32>
    %cst_20 = arith.constant dense<0.000000e+00> : vector<24xf32>
    %23 = vector.multi_reduction <add>, %22, %cst_20 [1] : vector<24x3xf32> to vector<24xf32>
    %24 = vector.shape_cast %23 : vector<24xf32> to vector<24x1xf32>
    %cst_21 = arith.constant 3.000000e+00 : f32
    %25 = vector.broadcast %cst_21 : f32 to vector<24x1xf32>
    %26 = arith.divf %24, %25 : vector<24x1xf32>
    %27 = vector.broadcast %26 : vector<24x1xf32> to vector<24x3xf32>
    %28 = arith.subf %22, %27 : vector<24x3xf32>
    %29 = arith.mulf %28, %28 : vector<24x3xf32>
    %cst_22 = arith.constant dense<0.000000e+00> : vector<24xf32>
    %30 = vector.multi_reduction <add>, %29, %cst_22 [1] : vector<24x3xf32> to vector<24xf32>
    %31 = vector.shape_cast %30 : vector<24xf32> to vector<24x1xf32>
    %cst_23 = arith.constant 3.000000e+00 : f32
    %32 = vector.broadcast %cst_23 : f32 to vector<24x1xf32>
    %33 = arith.divf %31, %32 : vector<24x1xf32>
    %cst_24 = arith.constant 9.99999974E-6 : f32
    %34 = vector.broadcast %cst_24 : f32 to vector<24x1xf32>
    %35 = arith.addf %33, %34 : vector<24x1xf32>
    %36 = math.rsqrt %35 : vector<24x1xf32>
    %37 = vector.broadcast %36 : vector<24x1xf32> to vector<24x3xf32>
    %38 = arith.mulf %28, %37 : vector<24x3xf32>
    %39 = vector.broadcast %14 : vector<1x3xf32> to vector<24x3xf32>
    %40 = arith.mulf %38, %39 : vector<24x3xf32>
    %41 = vector.broadcast %15 : vector<1x3xf32> to vector<24x3xf32>
    %42 = arith.addf %40, %41 : vector<24x3xf32>
    %c0_25 = arith.constant 0 : index
    %c0_26 = arith.constant 0 : index
    %43 = vector.load %arg10[%c0_25, %c0_26] : memref<24x3xf32, #tpu.memory_space<vmem>>, vector<24x3xf32>
    tpu.vector_store %arg10[%c0_25, %c0_26], %42 {strides = array<i32>} : memref<24x3xf32, #tpu.memory_space<vmem>>, vector<24x3xf32>,
    return
  }
  func.func @transform_0(%arg0: i32) -> (i32, i32) {
    %c0_i32 = arith.constant 0 : i32
    %c0_i32_0 = arith.constant 0 : i32
    return %arg0, %c0_i32 : i32, i32
  }
  func.func @transform_1(%arg0: i32) -> (i32, i32) {
    %c0_i32 = arith.constant 0 : i32
    %c0_i32_0 = arith.constant 0 : i32
    %c0_i32_1 = arith.constant 0 : i32
    return %c0_i32, %c0_i32_0 : i32, i32
  }
  func.func @transform_2(%arg0: i32) -> (i32, i32) {
    %c0_i32 = arith.constant 0 : i32
    %c0_i32_0 = arith.constant 0 : i32
    %c0_i32_1 = arith.constant 0 : i32
    return %c0_i32, %c0_i32_0 : i32, i32
  }
  func.func @transform_3(%arg0: i32) -> (i32, i32) {
    %c0_i32 = arith.constant 0 : i32
    %c0_i32_0 = arith.constant 0 : i32
    %c0_i32_1 = arith.constant 0 : i32
    return %c0_i32, %c0_i32_0 : i32, i32
  }
  func.func @transform_4(%arg0: i32) -> (i32, i32) {
    %c0_i32 = arith.constant 0 : i32
    %c0_i32_0 = arith.constant 0 : i32
    %c0_i32_1 = arith.constant 0 : i32
    return %c0_i32, %c0_i32_0 : i32, i32
  }
  func.func @transform_5(%arg0: i32) -> (i32, i32) {
    %c0_i32 = arith.constant 0 : i32
    %c0_i32_0 = arith.constant 0 : i32
    %c0_i32_1 = arith.constant 0 : i32
    return %c0_i32, %c0_i32_0 : i32, i32
  }
  func.func @transform_6(%arg0: i32) -> (i32, i32) {
    %c0_i32 = arith.constant 0 : i32
    %c0_i32_0 = arith.constant 0 : i32
    %c0_i32_1 = arith.constant 0 : i32
    return %c0_i32, %c0_i32_0 : i32, i32
  }
  func.func @transform_7(%arg0: i32) -> (i32, i32) {
    %c0_i32 = arith.constant 0 : i32
    %c0_i32_0 = arith.constant 0 : i32
    %c0_i32_1 = arith.constant 0 : i32
    return %c0_i32, %c0_i32_0 : i32, i32
  }
  func.func @transform_8(%arg0: i32) -> (i32, i32) {
    %c0_i32 = arith.constant 0 : i32
    %c0_i32_0 = arith.constant 0 : i32
    %c0_i32_1 = arith.constant 0 : i32
    return %c0_i32, %c0_i32_0 : i32, i32
  }
  func.func @transform_9(%arg0: i32) -> (i32, i32) {
    %c0_i32 = arith.constant 0 : i32
    %c0_i32_0 = arith.constant 0 : i32
    return %arg0, %c0_i32 : i32, i32
  }
}

module attributes {stable_mosaic.version = 11 : i64} {
  func.func @encoder_stack_kernel(%arg0: i32, %arg1: i32, %arg2: memref<2x8xf32, #tpu.memory_space<vmem>>, %arg3: memref<2x1xf32, #tpu.memory_space<vmem>>, %arg4: memref<2x36xf32, #tpu.memory_space<vmem>>, %arg5: memref<8x32xbf16, #tpu.memory_space<vmem>>, %arg6: memref<1x32xbf16, #tpu.memory_space<vmem>>, %arg7: memref<36x32xbf16, #tpu.memory_space<vmem>>, %arg8: memref<1x32xf32, #tpu.memory_space<vmem>>, %arg9: memref<8x32xbf16, #tpu.memory_space<vmem>>, %arg10: memref<1x32xbf16, #tpu.memory_space<vmem>>, %arg11: memref<36x32xbf16, #tpu.memory_space<vmem>>, %arg12: memref<1x32xf32, #tpu.memory_space<vmem>>, %arg13: memref<32x32xbf16, #tpu.memory_space<vmem>>, %arg14: memref<1x32xf32, #tpu.memory_space<vmem>>, %arg15: memref<1x32xf32, #tpu.memory_space<vmem>>, %arg16: memref<1x32xf32, #tpu.memory_space<vmem>>, %arg17: memref<1x32x32xbf16, #tpu.memory_space<vmem>>, %arg18: memref<1x1x32xf32, #tpu.memory_space<vmem>>, %arg19: memref<1x32x32xbf16, #tpu.memory_space<vmem>>, %arg20: memref<1x1x32xf32, #tpu.memory_space<vmem>>, %arg21: memref<1x32x32xbf16, #tpu.memory_space<vmem>>, %arg22: memref<1x1x32xf32, #tpu.memory_space<vmem>>, %arg23: memref<1x1x32xf32, #tpu.memory_space<vmem>>, %arg24: memref<1x1x32xf32, #tpu.memory_space<vmem>>, %arg25: memref<2x32xf32, #tpu.memory_space<vmem>>, %arg26: memref<2x32xf32, #tpu.memory_space<vmem>>) attributes {dimension_semantics = [#tpu.dimension_semantics<parallel>, #tpu.dimension_semantics<arbitrary>], iteration_bounds = array<i64: 1, 2>, scalar_prefetch = 0 : i64, scratch_operands = 1 : i64, tpu.core_type = #tpu.core_type<tc>, window_params = [{transform_indices = @transform_0, window_bounds = array<i64: 2, 8>}, {transform_indices = @transform_1, window_bounds = array<i64: 2, 1>}, {transform_indices = @transform_2, window_bounds = array<i64: 2, 36>}, {pipeline_mode = #tpu.pipeline_mode<synchronous>, transform_indices = @transform_3, window_bounds = array<i64: 8, 32>}, {pipeline_mode = #tpu.pipeline_mode<synchronous>, transform_indices = @transform_4, window_bounds = array<i64: 1, 32>}, {pipeline_mode = #tpu.pipeline_mode<synchronous>, transform_indices = @transform_5, window_bounds = array<i64: 36, 32>}, {pipeline_mode = #tpu.pipeline_mode<synchronous>, transform_indices = @transform_6, window_bounds = array<i64: 1, 32>}, {pipeline_mode = #tpu.pipeline_mode<synchronous>, transform_indices = @transform_7, window_bounds = array<i64: 8, 32>}, {pipeline_mode = #tpu.pipeline_mode<synchronous>, transform_indices = @transform_8, window_bounds = array<i64: 1, 32>}, {pipeline_mode = #tpu.pipeline_mode<synchronous>, transform_indices = @transform_9, window_bounds = array<i64: 36, 32>}, {pipeline_mode = #tpu.pipeline_mode<synchronous>, transform_indices = @transform_10, window_bounds = array<i64: 1, 32>}, {pipeline_mode = #tpu.pipeline_mode<synchronous>, transform_indices = @transform_11, window_bounds = array<i64: 32, 32>}, {pipeline_mode = #tpu.pipeline_mode<synchronous>, transform_indices = @transform_12, window_bounds = array<i64: 1, 32>}, {pipeline_mode = #tpu.pipeline_mode<synchronous>, transform_indices = @transform_13, window_bounds = array<i64: 1, 32>}, {pipeline_mode = #tpu.pipeline_mode<synchronous>, transform_indices = @transform_14, window_bounds = array<i64: 1, 32>}, {transform_indices = @transform_15, window_bounds = array<i64: 1, 32, 32>}, {transform_indices = @transform_16, window_bounds = array<i64: 1, 1, 32>}, {transform_indices = @transform_17, window_bounds = array<i64: 1, 32, 32>}, {transform_indices = @transform_18, window_bounds = array<i64: 1, 1, 32>}, {transform_indices = @transform_19, window_bounds = array<i64: 1, 32, 32>}, {transform_indices = @transform_20, window_bounds = array<i64: 1, 1, 32>}, {transform_indices = @transform_21, window_bounds = array<i64: 1, 1, 32>}, {transform_indices = @transform_22, window_bounds = array<i64: 1, 1, 32>}, {transform_indices = @transform_23, window_bounds = array<i64: 2, 32>}]} {
    %c0_i32 = arith.constant 0 : i32
    %0 = arith.cmpi eq, %arg1, %c0_i32 : i32
    %1 = arith.extui %0 : i1 to i32
    %c0_i32_0 = arith.constant 0 : i32
    %2 = arith.cmpi ne, %1, %c0_i32_0 : i32
    scf.if %2 {
      %c0 = arith.constant 0 : index
      %c0_4 = arith.constant 0 : index
      %9 = vector.load %arg2[%c0, %c0_4] : memref<2x8xf32, #tpu.memory_space<vmem>>, vector<2x8xf32>
      %10 = arith.truncf %9 : vector<2x8xf32> to vector<2x8xbf16>
      %c0_5 = arith.constant 0 : index
      %c0_6 = arith.constant 0 : index
      %11 = vector.load %arg4[%c0_5, %c0_6] : memref<2x36xf32, #tpu.memory_space<vmem>>, vector<2x36xf32>
      %12 = arith.truncf %11 : vector<2x36xf32> to vector<2x36xbf16>
      %c0_7 = arith.constant 0 : index
      %c0_8 = arith.constant 0 : index
      %13 = vector.load %arg3[%c0_7, %c0_8] : memref<2x1xf32, #tpu.memory_space<vmem>>, vector<2x1xf32>
      %c0_9 = arith.constant 0 : index
      %c0_10 = arith.constant 0 : index
      %14 = vector.load %arg5[%c0_9, %c0_10] : memref<8x32xbf16, #tpu.memory_space<vmem>>, vector<8x32xbf16>
      %cst = arith.constant dense<0.000000e+00> : vector<2x32xf32>
      %15 = tpu.matmul %10, %14, %cst {dimension_numbers = #tpu.dot_dimension_numbers<[1], [0], [0], [1], [0, 0, 1, 1], [], []>} : vector<2x8xbf16>, vector<8x32xbf16>, vector<2x32xf32> -> vector<2x32xf32>
      %c0_11 = arith.constant 0 : index
      %c0_12 = arith.constant 0 : index
      %16 = vector.load %arg7[%c0_11, %c0_12] : memref<36x32xbf16, #tpu.memory_space<vmem>>, vector<36x32xbf16>
      %cst_13 = arith.constant dense<0.000000e+00> : vector<2x32xf32>
      %17 = tpu.matmul %12, %16, %cst_13 {dimension_numbers = #tpu.dot_dimension_numbers<[1], [0], [0], [1], [0, 0, 1, 1], [], []>} : vector<2x36xbf16>, vector<36x32xbf16>, vector<2x32xf32> -> vector<2x32xf32>
      %18 = arith.addf %15, %17 : vector<2x32xf32>
      %c0_14 = arith.constant 0 : index
      %c0_15 = arith.constant 0 : index
      %19 = vector.load %arg6[%c0_14, %c0_15] : memref<1x32xbf16, #tpu.memory_space<vmem>>, vector<1x32xbf16>
      %20 = arith.extf %19 : vector<1x32xbf16> to vector<1x32xf32>
      %21 = vector.broadcast %13 : vector<2x1xf32> to vector<2x32xf32>
      %22 = vector.broadcast %20 : vector<1x32xf32> to vector<2x32xf32>
      %23 = arith.mulf %21, %22 : vector<2x32xf32>
      %24 = arith.addf %18, %23 : vector<2x32xf32>
      %c0_16 = arith.constant 0 : index
      %c0_17 = arith.constant 0 : index
      %25 = vector.load %arg8[%c0_16, %c0_17] : memref<1x32xf32, #tpu.memory_space<vmem>>, vector<1x32xf32>
      %26 = vector.broadcast %25 : vector<1x32xf32> to vector<2x32xf32>
      %27 = arith.addf %24, %26 : vector<2x32xf32>
      %c0_18 = arith.constant 0 : index
      %c0_19 = arith.constant 0 : index
      %28 = vector.load %arg9[%c0_18, %c0_19] : memref<8x32xbf16, #tpu.memory_space<vmem>>, vector<8x32xbf16>
      %cst_20 = arith.constant dense<0.000000e+00> : vector<2x32xf32>
      %29 = tpu.matmul %10, %28, %cst_20 {dimension_numbers = #tpu.dot_dimension_numbers<[1], [0], [0], [1], [0, 0, 1, 1], [], []>} : vector<2x8xbf16>, vector<8x32xbf16>, vector<2x32xf32> -> vector<2x32xf32>
      %c0_21 = arith.constant 0 : index
      %c0_22 = arith.constant 0 : index
      %30 = vector.load %arg11[%c0_21, %c0_22] : memref<36x32xbf16, #tpu.memory_space<vmem>>, vector<36x32xbf16>
      %cst_23 = arith.constant dense<0.000000e+00> : vector<2x32xf32>
      %31 = tpu.matmul %12, %30, %cst_23 {dimension_numbers = #tpu.dot_dimension_numbers<[1], [0], [0], [1], [0, 0, 1, 1], [], []>} : vector<2x36xbf16>, vector<36x32xbf16>, vector<2x32xf32> -> vector<2x32xf32>
      %32 = arith.addf %29, %31 : vector<2x32xf32>
      %c0_24 = arith.constant 0 : index
      %c0_25 = arith.constant 0 : index
      %33 = vector.load %arg10[%c0_24, %c0_25] : memref<1x32xbf16, #tpu.memory_space<vmem>>, vector<1x32xbf16>
      %34 = arith.extf %33 : vector<1x32xbf16> to vector<1x32xf32>
      %35 = vector.broadcast %13 : vector<2x1xf32> to vector<2x32xf32>
      %36 = vector.broadcast %34 : vector<1x32xf32> to vector<2x32xf32>
      %37 = arith.mulf %35, %36 : vector<2x32xf32>
      %38 = arith.addf %32, %37 : vector<2x32xf32>
      %c0_26 = arith.constant 0 : index
      %c0_27 = arith.constant 0 : index
      %39 = vector.load %arg12[%c0_26, %c0_27] : memref<1x32xf32, #tpu.memory_space<vmem>>, vector<1x32xf32>
      %40 = vector.broadcast %39 : vector<1x32xf32> to vector<2x32xf32>
      %41 = arith.addf %38, %40 : vector<2x32xf32>
      %c0_28 = arith.constant 0 : index
      %c0_29 = arith.constant 0 : index
      %42 = vector.load %arg13[%c0_28, %c0_29] : memref<32x32xbf16, #tpu.memory_space<vmem>>, vector<32x32xbf16>
      %c0_30 = arith.constant 0 : index
      %c0_31 = arith.constant 0 : index
      %43 = vector.load %arg14[%c0_30, %c0_31] : memref<1x32xf32, #tpu.memory_space<vmem>>, vector<1x32xf32>
      %c0_32 = arith.constant 0 : index
      %c0_33 = arith.constant 0 : index
      %44 = vector.load %arg15[%c0_32, %c0_33] : memref<1x32xf32, #tpu.memory_space<vmem>>, vector<1x32xf32>
      %c0_34 = arith.constant 0 : index
      %c0_35 = arith.constant 0 : index
      %45 = vector.load %arg16[%c0_34, %c0_35] : memref<1x32xf32, #tpu.memory_space<vmem>>, vector<1x32xf32>
      %cst_36 = arith.constant 0.000000e+00 : f32
      %46 = vector.broadcast %cst_36 : f32 to vector<2x32xf32>
      %47 = arith.maximumf %27, %46 : vector<2x32xf32>
      %48 = arith.truncf %47 : vector<2x32xf32> to vector<2x32xbf16>
      %cst_37 = arith.constant dense<0.000000e+00> : vector<2x32xf32>
      %49 = tpu.matmul %48, %42, %cst_37 {dimension_numbers = #tpu.dot_dimension_numbers<[1], [0], [0], [1], [0, 0, 1, 1], [], []>} : vector<2x32xbf16>, vector<32x32xbf16>, vector<2x32xf32> -> vector<2x32xf32>
      %50 = vector.broadcast %43 : vector<1x32xf32> to vector<2x32xf32>
      %51 = arith.addf %49, %50 : vector<2x32xf32>
      %52 = arith.addf %51, %41 : vector<2x32xf32>
      %cst_38 = arith.constant dense<0.000000e+00> : vector<2xf32>
      %53 = vector.multi_reduction <add>, %52, %cst_38 [1] : vector<2x32xf32> to vector<2xf32>
      %54 = vector.shape_cast %53 : vector<2xf32> to vector<2x1xf32>
      %cst_39 = arith.constant 3.200000e+01 : f32
      %55 = vector.broadcast %cst_39 : f32 to vector<2x1xf32>
      %56 = arith.divf %54, %55 : vector<2x1xf32>
      %57 = vector.broadcast %56 : vector<2x1xf32> to vector<2x32xf32>
      %58 = arith.subf %52, %57 : vector<2x32xf32>
      %59 = arith.mulf %58, %58 : vector<2x32xf32>
      %cst_40 = arith.constant dense<0.000000e+00> : vector<2xf32>
      %60 = vector.multi_reduction <add>, %59, %cst_40 [1] : vector<2x32xf32> to vector<2xf32>
      %61 = vector.shape_cast %60 : vector<2xf32> to vector<2x1xf32>
      %cst_41 = arith.constant 3.200000e+01 : f32
      %62 = vector.broadcast %cst_41 : f32 to vector<2x1xf32>
      %63 = arith.divf %61, %62 : vector<2x1xf32>
      %cst_42 = arith.constant 9.99999974E-6 : f32
      %64 = vector.broadcast %cst_42 : f32 to vector<2x1xf32>
      %65 = arith.addf %63, %64 : vector<2x1xf32>
      %66 = math.rsqrt %65 : vector<2x1xf32>
      %67 = vector.broadcast %66 : vector<2x1xf32> to vector<2x32xf32>
      %68 = arith.mulf %58, %67 : vector<2x32xf32>
      %69 = vector.broadcast %44 : vector<1x32xf32> to vector<2x32xf32>
      %70 = arith.mulf %68, %69 : vector<2x32xf32>
      %71 = vector.broadcast %45 : vector<1x32xf32> to vector<2x32xf32>
      %72 = arith.addf %70, %71 : vector<2x32xf32>
      %c0_43 = arith.constant 0 : index
      %c0_44 = arith.constant 0 : index
      %73 = vector.load %arg26[%c0_43, %c0_44] : memref<2x32xf32, #tpu.memory_space<vmem>>, vector<2x32xf32>
      tpu.vector_store %arg26[%c0_43, %c0_44], %72 {strides = array<i32>} : memref<2x32xf32, #tpu.memory_space<vmem>>, vector<2x32xf32>,
    } else {
    }
    %c0_i32_1 = arith.constant 0 : i32
    %3 = arith.cmpi sgt, %arg1, %c0_i32_1 : i32
    %4 = arith.extui %3 : i1 to i32
    %c0_i32_2 = arith.constant 0 : i32
    %5 = arith.cmpi ne, %4, %c0_i32_2 : i32
    scf.if %5 {
      %c0 = arith.constant 0 : index
      %c0_4 = arith.constant 0 : index
      %9 = vector.load %arg26[%c0, %c0_4] : memref<2x32xf32, #tpu.memory_space<vmem>>, vector<2x32xf32>
      %10 = arith.truncf %9 : vector<2x32xf32> to vector<2x32xbf16>
      %c0_5 = arith.constant 0 : index
      %c0_6 = arith.constant 0 : index
      %c0_7 = arith.constant 0 : index
      %11 = vector.load %arg17[%c0_5, %c0_6, %c0_7] : memref<1x32x32xbf16, #tpu.memory_space<vmem>>, vector<1x32x32xbf16>
      %12 = vector.shape_cast %11 : vector<1x32x32xbf16> to vector<32x32xbf16>
      %cst = arith.constant dense<0.000000e+00> : vector<2x32xf32>
      %13 = tpu.matmul %10, %12, %cst {dimension_numbers = #tpu.dot_dimension_numbers<[1], [0], [0], [1], [0, 0, 1, 1], [], []>} : vector<2x32xbf16>, vector<32x32xbf16>, vector<2x32xf32> -> vector<2x32xf32>
      %c0_8 = arith.constant 0 : index
      %c0_9 = arith.constant 0 : index
      %c0_10 = arith.constant 0 : index
      %14 = vector.load %arg18[%c0_8, %c0_9, %c0_10] : memref<1x1x32xf32, #tpu.memory_space<vmem>>, vector<1x1x32xf32>
      %15 = vector.shape_cast %14 : vector<1x1x32xf32> to vector<1x32xf32>
      %16 = vector.broadcast %15 : vector<1x32xf32> to vector<2x32xf32>
      %17 = arith.addf %13, %16 : vector<2x32xf32>
      %c0_11 = arith.constant 0 : index
      %c0_12 = arith.constant 0 : index
      %c0_13 = arith.constant 0 : index
      %18 = vector.load %arg21[%c0_11, %c0_12, %c0_13] : memref<1x32x32xbf16, #tpu.memory_space<vmem>>, vector<1x32x32xbf16>
      %19 = vector.shape_cast %18 : vector<1x32x32xbf16> to vector<32x32xbf16>
      %cst_14 = arith.constant dense<0.000000e+00> : vector<2x32xf32>
      %20 = tpu.matmul %10, %19, %cst_14 {dimension_numbers = #tpu.dot_dimension_numbers<[1], [0], [0], [1], [0, 0, 1, 1], [], []>} : vector<2x32xbf16>, vector<32x32xbf16>, vector<2x32xf32> -> vector<2x32xf32>
      %c0_15 = arith.constant 0 : index
      %c0_16 = arith.constant 0 : index
      %c0_17 = arith.constant 0 : index
      %21 = vector.load %arg22[%c0_15, %c0_16, %c0_17] : memref<1x1x32xf32, #tpu.memory_space<vmem>>, vector<1x1x32xf32>
      %22 = vector.shape_cast %21 : vector<1x1x32xf32> to vector<1x32xf32>
      %23 = vector.broadcast %22 : vector<1x32xf32> to vector<2x32xf32>
      %24 = arith.addf %20, %23 : vector<2x32xf32>
      %c0_18 = arith.constant 0 : index
      %c0_19 = arith.constant 0 : index
      %c0_20 = arith.constant 0 : index
      %25 = vector.load %arg19[%c0_18, %c0_19, %c0_20] : memref<1x32x32xbf16, #tpu.memory_space<vmem>>, vector<1x32x32xbf16>
      %26 = vector.shape_cast %25 : vector<1x32x32xbf16> to vector<32x32xbf16>
      %c0_21 = arith.constant 0 : index
      %c0_22 = arith.constant 0 : index
      %c0_23 = arith.constant 0 : index
      %27 = vector.load %arg20[%c0_21, %c0_22, %c0_23] : memref<1x1x32xf32, #tpu.memory_space<vmem>>, vector<1x1x32xf32>
      %28 = vector.shape_cast %27 : vector<1x1x32xf32> to vector<1x32xf32>
      %c0_24 = arith.constant 0 : index
      %c0_25 = arith.constant 0 : index
      %c0_26 = arith.constant 0 : index
      %29 = vector.load %arg23[%c0_24, %c0_25, %c0_26] : memref<1x1x32xf32, #tpu.memory_space<vmem>>, vector<1x1x32xf32>
      %30 = vector.shape_cast %29 : vector<1x1x32xf32> to vector<1x32xf32>
      %c0_27 = arith.constant 0 : index
      %c0_28 = arith.constant 0 : index
      %c0_29 = arith.constant 0 : index
      %31 = vector.load %arg24[%c0_27, %c0_28, %c0_29] : memref<1x1x32xf32, #tpu.memory_space<vmem>>, vector<1x1x32xf32>
      %32 = vector.shape_cast %31 : vector<1x1x32xf32> to vector<1x32xf32>
      %cst_30 = arith.constant 0.000000e+00 : f32
      %33 = vector.broadcast %cst_30 : f32 to vector<2x32xf32>
      %34 = arith.maximumf %17, %33 : vector<2x32xf32>
      %35 = arith.truncf %34 : vector<2x32xf32> to vector<2x32xbf16>
      %cst_31 = arith.constant dense<0.000000e+00> : vector<2x32xf32>
      %36 = tpu.matmul %35, %26, %cst_31 {dimension_numbers = #tpu.dot_dimension_numbers<[1], [0], [0], [1], [0, 0, 1, 1], [], []>} : vector<2x32xbf16>, vector<32x32xbf16>, vector<2x32xf32> -> vector<2x32xf32>
      %37 = vector.broadcast %28 : vector<1x32xf32> to vector<2x32xf32>
      %38 = arith.addf %36, %37 : vector<2x32xf32>
      %39 = arith.addf %38, %24 : vector<2x32xf32>
      %cst_32 = arith.constant dense<0.000000e+00> : vector<2xf32>
      %40 = vector.multi_reduction <add>, %39, %cst_32 [1] : vector<2x32xf32> to vector<2xf32>
      %41 = vector.shape_cast %40 : vector<2xf32> to vector<2x1xf32>
      %cst_33 = arith.constant 3.200000e+01 : f32
      %42 = vector.broadcast %cst_33 : f32 to vector<2x1xf32>
      %43 = arith.divf %41, %42 : vector<2x1xf32>
      %44 = vector.broadcast %43 : vector<2x1xf32> to vector<2x32xf32>
      %45 = arith.subf %39, %44 : vector<2x32xf32>
      %46 = arith.mulf %45, %45 : vector<2x32xf32>
      %cst_34 = arith.constant dense<0.000000e+00> : vector<2xf32>
      %47 = vector.multi_reduction <add>, %46, %cst_34 [1] : vector<2x32xf32> to vector<2xf32>
      %48 = vector.shape_cast %47 : vector<2xf32> to vector<2x1xf32>
      %cst_35 = arith.constant 3.200000e+01 : f32
      %49 = vector.broadcast %cst_35 : f32 to vector<2x1xf32>
      %50 = arith.divf %48, %49 : vector<2x1xf32>
      %cst_36 = arith.constant 9.99999974E-6 : f32
      %51 = vector.broadcast %cst_36 : f32 to vector<2x1xf32>
      %52 = arith.addf %50, %51 : vector<2x1xf32>
      %53 = math.rsqrt %52 : vector<2x1xf32>
      %54 = vector.broadcast %53 : vector<2x1xf32> to vector<2x32xf32>
      %55 = arith.mulf %45, %54 : vector<2x32xf32>
      %56 = vector.broadcast %30 : vector<1x32xf32> to vector<2x32xf32>
      %57 = arith.mulf %55, %56 : vector<2x32xf32>
      %58 = vector.broadcast %32 : vector<1x32xf32> to vector<2x32xf32>
      %59 = arith.addf %57, %58 : vector<2x32xf32>
      %c0_37 = arith.constant 0 : index
      %c0_38 = arith.constant 0 : index
      %60 = vector.load %arg26[%c0_37, %c0_38] : memref<2x32xf32, #tpu.memory_space<vmem>>, vector<2x32xf32>
      tpu.vector_store %arg26[%c0_37, %c0_38], %59 {strides = array<i32>} : memref<2x32xf32, #tpu.memory_space<vmem>>, vector<2x32xf32>,
    } else {
    }
    %c1_i32 = arith.constant 1 : i32
    %6 = arith.cmpi eq, %arg1, %c1_i32 : i32
    %7 = arith.extui %6 : i1 to i32
    %c0_i32_3 = arith.constant 0 : i32
    %8 = arith.cmpi ne, %7, %c0_i32_3 : i32
    scf.if %8 {
      %c0 = arith.constant 0 : index
      %c0_4 = arith.constant 0 : index
      %9 = vector.load %arg26[%c0, %c0_4] : memref<2x32xf32, #tpu.memory_space<vmem>>, vector<2x32xf32>
      %c0_5 = arith.constant 0 : index
      %c0_6 = arith.constant 0 : index
      %10 = vector.load %arg25[%c0_5, %c0_6] : memref<2x32xf32, #tpu.memory_space<vmem>>, vector<2x32xf32>
      tpu.vector_store %arg25[%c0_5, %c0_6], %9 {strides = array<i32>} : memref<2x32xf32, #tpu.memory_space<vmem>>, vector<2x32xf32>,
    } else {
    }
    return
  }
  func.func @transform_0(%arg0: i32, %arg1: i32) -> (i32, i32) {
    %c0_i32 = arith.constant 0 : i32
    %c0_i32_0 = arith.constant 0 : i32
    return %arg0, %c0_i32 : i32, i32
  }
  func.func @transform_1(%arg0: i32, %arg1: i32) -> (i32, i32) {
    %c0_i32 = arith.constant 0 : i32
    %c0_i32_0 = arith.constant 0 : i32
    return %arg0, %c0_i32 : i32, i32
  }
  func.func @transform_2(%arg0: i32, %arg1: i32) -> (i32, i32) {
    %c0_i32 = arith.constant 0 : i32
    %c0_i32_0 = arith.constant 0 : i32
    return %arg0, %c0_i32 : i32, i32
  }
  func.func @transform_3(%arg0: i32, %arg1: i32) -> (i32, i32) {
    %c0_i32 = arith.constant 0 : i32
    %c0_i32_0 = arith.constant 0 : i32
    %c0_i32_1 = arith.constant 0 : i32
    return %c0_i32, %c0_i32_0 : i32, i32
  }
  func.func @transform_4(%arg0: i32, %arg1: i32) -> (i32, i32) {
    %c0_i32 = arith.constant 0 : i32
    %c0_i32_0 = arith.constant 0 : i32
    %c0_i32_1 = arith.constant 0 : i32
    return %c0_i32, %c0_i32_0 : i32, i32
  }
  func.func @transform_5(%arg0: i32, %arg1: i32) -> (i32, i32) {
    %c0_i32 = arith.constant 0 : i32
    %c0_i32_0 = arith.constant 0 : i32
    %c0_i32_1 = arith.constant 0 : i32
    return %c0_i32, %c0_i32_0 : i32, i32
  }
  func.func @transform_6(%arg0: i32, %arg1: i32) -> (i32, i32) {
    %c0_i32 = arith.constant 0 : i32
    %c0_i32_0 = arith.constant 0 : i32
    %c0_i32_1 = arith.constant 0 : i32
    return %c0_i32, %c0_i32_0 : i32, i32
  }
  func.func @transform_7(%arg0: i32, %arg1: i32) -> (i32, i32) {
    %c0_i32 = arith.constant 0 : i32
    %c0_i32_0 = arith.constant 0 : i32
    %c0_i32_1 = arith.constant 0 : i32
    return %c0_i32, %c0_i32_0 : i32, i32
  }
  func.func @transform_8(%arg0: i32, %arg1: i32) -> (i32, i32) {
    %c0_i32 = arith.constant 0 : i32
    %c0_i32_0 = arith.constant 0 : i32
    %c0_i32_1 = arith.constant 0 : i32
    return %c0_i32, %c0_i32_0 : i32, i32
  }
  func.func @transform_9(%arg0: i32, %arg1: i32) -> (i32, i32) {
    %c0_i32 = arith.constant 0 : i32
    %c0_i32_0 = arith.constant 0 : i32
    %c0_i32_1 = arith.constant 0 : i32
    return %c0_i32, %c0_i32_0 : i32, i32
  }
  func.func @transform_10(%arg0: i32, %arg1: i32) -> (i32, i32) {
    %c0_i32 = arith.constant 0 : i32
    %c0_i32_0 = arith.constant 0 : i32
    %c0_i32_1 = arith.constant 0 : i32
    return %c0_i32, %c0_i32_0 : i32, i32
  }
  func.func @transform_11(%arg0: i32, %arg1: i32) -> (i32, i32) {
    %c0_i32 = arith.constant 0 : i32
    %c0_i32_0 = arith.constant 0 : i32
    %c0_i32_1 = arith.constant 0 : i32
    return %c0_i32, %c0_i32_0 : i32, i32
  }
  func.func @transform_12(%arg0: i32, %arg1: i32) -> (i32, i32) {
    %c0_i32 = arith.constant 0 : i32
    %c0_i32_0 = arith.constant 0 : i32
    %c0_i32_1 = arith.constant 0 : i32
    return %c0_i32, %c0_i32_0 : i32, i32
  }
  func.func @transform_13(%arg0: i32, %arg1: i32) -> (i32, i32) {
    %c0_i32 = arith.constant 0 : i32
    %c0_i32_0 = arith.constant 0 : i32
    %c0_i32_1 = arith.constant 0 : i32
    return %c0_i32, %c0_i32_0 : i32, i32
  }
  func.func @transform_14(%arg0: i32, %arg1: i32) -> (i32, i32) {
    %c0_i32 = arith.constant 0 : i32
    %c0_i32_0 = arith.constant 0 : i32
    %c0_i32_1 = arith.constant 0 : i32
    return %c0_i32, %c0_i32_0 : i32, i32
  }
  func.func @transform_15(%arg0: i32, %arg1: i32) -> (i32, i32, i32) {
    %c1_i32 = arith.constant 1 : i32
    %0 = arith.subi %arg1, %c1_i32 : i32
    %c0_i32 = arith.constant 0 : i32
    %1 = arith.maxsi %0, %c0_i32 : i32
    %c0_i32_0 = arith.constant 0 : i32
    %c0_i32_1 = arith.constant 0 : i32
    %c0_i32_2 = arith.constant 0 : i32
    return %1, %c0_i32_0, %c0_i32_1 : i32, i32, i32
  }
  func.func @transform_16(%arg0: i32, %arg1: i32) -> (i32, i32, i32) {
    %c1_i32 = arith.constant 1 : i32
    %0 = arith.subi %arg1, %c1_i32 : i32
    %c0_i32 = arith.constant 0 : i32
    %1 = arith.maxsi %0, %c0_i32 : i32
    %c0_i32_0 = arith.constant 0 : i32
    %c0_i32_1 = arith.constant 0 : i32
    %c0_i32_2 = arith.constant 0 : i32
    return %1, %c0_i32_0, %c0_i32_1 : i32, i32, i32
  }
  func.func @transform_17(%arg0: i32, %arg1: i32) -> (i32, i32, i32) {
    %c1_i32 = arith.constant 1 : i32
    %0 = arith.subi %arg1, %c1_i32 : i32
    %c0_i32 = arith.constant 0 : i32
    %1 = arith.maxsi %0, %c0_i32 : i32
    %c0_i32_0 = arith.constant 0 : i32
    %c0_i32_1 = arith.constant 0 : i32
    %c0_i32_2 = arith.constant 0 : i32
    return %1, %c0_i32_0, %c0_i32_1 : i32, i32, i32
  }
  func.func @transform_18(%arg0: i32, %arg1: i32) -> (i32, i32, i32) {
    %c1_i32 = arith.constant 1 : i32
    %0 = arith.subi %arg1, %c1_i32 : i32
    %c0_i32 = arith.constant 0 : i32
    %1 = arith.maxsi %0, %c0_i32 : i32
    %c0_i32_0 = arith.constant 0 : i32
    %c0_i32_1 = arith.constant 0 : i32
    %c0_i32_2 = arith.constant 0 : i32
    return %1, %c0_i32_0, %c0_i32_1 : i32, i32, i32
  }
  func.func @transform_19(%arg0: i32, %arg1: i32) -> (i32, i32, i32) {
    %c1_i32 = arith.constant 1 : i32
    %0 = arith.subi %arg1, %c1_i32 : i32
    %c0_i32 = arith.constant 0 : i32
    %1 = arith.maxsi %0, %c0_i32 : i32
    %c0_i32_0 = arith.constant 0 : i32
    %c0_i32_1 = arith.constant 0 : i32
    %c0_i32_2 = arith.constant 0 : i32
    return %1, %c0_i32_0, %c0_i32_1 : i32, i32, i32
  }
  func.func @transform_20(%arg0: i32, %arg1: i32) -> (i32, i32, i32) {
    %c1_i32 = arith.constant 1 : i32
    %0 = arith.subi %arg1, %c1_i32 : i32
    %c0_i32 = arith.constant 0 : i32
    %1 = arith.maxsi %0, %c0_i32 : i32
    %c0_i32_0 = arith.constant 0 : i32
    %c0_i32_1 = arith.constant 0 : i32
    %c0_i32_2 = arith.constant 0 : i32
    return %1, %c0_i32_0, %c0_i32_1 : i32, i32, i32
  }
  func.func @transform_21(%arg0: i32, %arg1: i32) -> (i32, i32, i32) {
    %c1_i32 = arith.constant 1 : i32
    %0 = arith.subi %arg1, %c1_i32 : i32
    %c0_i32 = arith.constant 0 : i32
    %1 = arith.maxsi %0, %c0_i32 : i32
    %c0_i32_0 = arith.constant 0 : i32
    %c0_i32_1 = arith.constant 0 : i32
    %c0_i32_2 = arith.constant 0 : i32
    return %1, %c0_i32_0, %c0_i32_1 : i32, i32, i32
  }
  func.func @transform_22(%arg0: i32, %arg1: i32) -> (i32, i32, i32) {
    %c1_i32 = arith.constant 1 : i32
    %0 = arith.subi %arg1, %c1_i32 : i32
    %c0_i32 = arith.constant 0 : i32
    %1 = arith.maxsi %0, %c0_i32 : i32
    %c0_i32_0 = arith.constant 0 : i32
    %c0_i32_1 = arith.constant 0 : i32
    %c0_i32_2 = arith.constant 0 : i32
    return %1, %c0_i32_0, %c0_i32_1 : i32, i32, i32
  }
  func.func @transform_23(%arg0: i32, %arg1: i32) -> (i32, i32) {
    %c0_i32 = arith.constant 0 : i32
    %c0_i32_0 = arith.constant 0 : i32
    return %arg0, %c0_i32 : i32, i32
  }
}

</mosaic_0001>

<llo_original>
// kernel: a_call__.2
$region0: #{a_call__.2}
  #allocation0 [shape = 'u32[]', space=smem, size = 0x4, offset = 0x4, fixed_abs, tag = 'smem constant byte address 0x4 - core index']
  #allocation1 [shape = 'u32[72,128]{1,0:T(1,128)}', space=vmem, size = 0x9000, scoped, tag = 'internal scratch']
  %s0 = inlined_call_operand.vmem [shape: f32[24,4], index: 0, kind: input, shape index: {}]
  %s1 = inlined_call_operand.vmem [shape: bf16[4,16], index: 1, kind: input, shape index: {}]
  %s2 = inlined_call_operand.vmem [shape: f32[1,16], index: 2, kind: input, shape index: {}]
  %s3 = inlined_call_operand.vmem [shape: bf16[16,3], index: 3, kind: input, shape index: {}]
  %s4 = inlined_call_operand.vmem [shape: f32[1,3], index: 4, kind: input, shape index: {}]
  %s5 = inlined_call_operand.vmem [shape: bf16[4,3], index: 5, kind: input, shape index: {}]
  %s6 = inlined_call_operand.vmem [shape: f32[1,3], index: 6, kind: input, shape index: {}]
  %s7 = inlined_call_operand.vmem [shape: f32[1,3], index: 7, kind: input, shape index: {}]
  %s8 = inlined_call_operand.vmem [shape: f32[1,3], index: 8, kind: input, shape index: {}]
  %s9 = inlined_call_operand.vmem [shape: f32[24,3], index: 9, kind: output, shape index: {}]
  %s10 = sld [smem:[#allocation0]]
  $region46: #{a_call__.2} parent=0
    _
  %s12 = ssub.s32 1, %s10
  %s13 = scalar_select 0, %s12, %s10
  // Predicated region
  $region2: #{a_call__.2} parent=0 // pred_check
    _
  $region3: #{a_call__.2} parent=0 // pred_check_branch
    %15 = sbr.rel (0) target = $region5
  $region4: #{a_call__.2} parent=0 // pred_region
    _
  $region5: #{a_call__.2} parent=0 // pred_fallthru
    _
  // Predicated region
  $region6: #{a_call__.2} parent=0 // pred_check
    _
  $region7: #{a_call__.2} parent=0 // pred_check_branch
    %17 = sbr.rel (0) target = $region9
  $region8: #{a_call__.2} parent=0 // pred_region
    _
  $region9: #{a_call__.2} parent=0 // pred_fallthru
    _
  // Predicated region
  $region10: #{a_call__.2} parent=0 // pred_check
    _
  $region11: #{a_call__.2} parent=0 // pred_check_branch
    %19 = sbr.rel (0) target = $region13
  $region12: #{a_call__.2} parent=0 // pred_region
    _
  $region13: #{a_call__.2} parent=0 // pred_fallthru
    _
  // Predicated region
  $region14: #{a_call__.2} parent=0 // pred_check
    _
  $region15: #{a_call__.2} parent=0 // pred_check_branch
    %21 = sbr.rel (0) target = $region17
  $region16: #{a_call__.2} parent=0 // pred_region
    _
  $region17: #{a_call__.2} parent=0 // pred_fallthru
    _
  // Predicated region
  $region18: #{a_call__.2} parent=0 // pred_check
    _
  $region19: #{a_call__.2} parent=0 // pred_check_branch
    %23 = sbr.rel (0) target = $region21
  $region20: #{a_call__.2} parent=0 // pred_region
    _
  $region21: #{a_call__.2} parent=0 // pred_fallthru
    _
  // Predicated region
  $region22: #{a_call__.2} parent=0 // pred_check
    _
  $region23: #{a_call__.2} parent=0 // pred_check_branch
    %25 = sbr.rel (0) target = $region25
  $region24: #{a_call__.2} parent=0 // pred_region
    _
  $region25: #{a_call__.2} parent=0 // pred_fallthru
    _
  // Predicated region
  $region26: #{a_call__.2} parent=0 // pred_check
    _
  $region27: #{a_call__.2} parent=0 // pred_check_branch
    %27 = sbr.rel (0) target = $region29
  $region28: #{a_call__.2} parent=0 // pred_region
    _
  $region29: #{a_call__.2} parent=0 // pred_fallthru
    _
  // Predicated region
  $region30: #{a_call__.2} parent=0 // pred_check
    _
  $region31: #{a_call__.2} parent=0 // pred_check_branch
    %29 = sbr.rel (0) target = $region33
  $region32: #{a_call__.2} parent=0 // pred_region
    _
  $region33: #{a_call__.2} parent=0 // pred_fallthru
    _
  // Predicated region
  $region34: #{a_call__.2} parent=0 // pred_check
    _
  $region35: #{a_call__.2} parent=0 // pred_check_branch
    %31 = sbr.rel (0) target = $region37
  $region36: #{a_call__.2} parent=0 // pred_region
    _
  $region37: #{a_call__.2} parent=0 // pred_fallthru
    _
  %v33 = vld [vmem:[%s0] sm:$0xff]
  %v34 = vld [vmem:[%s0 + $0x8] sm:$0xff]
  %v35 = vld [vmem:[%s0 + $0x10] sm:$0xff]
  %v36 = vpack.c.bf16 %v34, %v33
  %v37 = vpack.c.bf16 %v35, %v35
  %v38 = vld [vmem:[%s1] sm:$0x3]
  %v39 = vld [vmem:[%s2] sm:$0x1]
  %v41 = vperm.slane %v39, 0
  %vm43 = vcmask 31744
  %v45 = vsel %vm43, %v36, 0
  %v48 = vsel %vm43, %v37, 0
  %vm50 = vcmask 1041408
  %v52 = vsel %vm50, %v38, 0
  %54 = vmatpush.bf16.msra.mxu0 0
  %55 = vmatpush.bf16.msra.mxu0 0
  %56 = vmatpush.bf16.msra.mxu0 0
  %57 = vmatpush.bf16.msra.mxu0 0
  %58 = vmatpush.bf16.msra.mxu0 0
  %59 = vmatpush.bf16.msra.mxu0 0
  %60 = vmatpush.bf16.msra.mxu0 0
  %61 = vmatpush.bf16.msra.mxu0 %v52
  %62 = vmatmul.bf16.gmra.mxu0 %v45
  %v63 = vpop.f32.mrf.mxu0
  %v64 = vadd.f32 %v41, %v63
  %v65 = vpop.f32.mrf.mxu0
  %v66 = vadd.f32 %v41, %v65
  %67 = vmatmul.bf16.gmra.mxu0 %v48
  %v68 = vpop.f32.mrf.mxu0
  %v69 = vadd.f32 %v41, %v68
  %v70 = vpop.f32.mrf.mxu0
  %71 = vdwg.mxu0
  %v72 = vld [vmem:[%s5] sm:$0x3]
  %v73 = vld [vmem:[%s6] sm:$0x1]
  %v75 = vperm.slane %v73, 0
  %v78 = vsel %vm50, %v72, 0
  %80 = vmatpush.bf16.msra.mxu0 0
  %81 = vmatpush.bf16.msra.mxu0 0
  %82 = vmatpush.bf16.msra.mxu0 0
  %83 = vmatpush.bf16.msra.mxu0 0
  %84 = vmatpush.bf16.msra.mxu0 0
  %85 = vmatpush.bf16.msra.mxu0 0
  %86 = vmatpush.bf16.msra.mxu0 0
  %87 = vmatpush.bf16.msra.mxu0 %v78
  %88 = vmatmul.bf16.gmra.mxu0 %v45
  %v89 = vpop.f32.mrf.mxu0
  %v90 = vadd.f32 %v75, %v89
  %v91 = vpop.f32.mrf.mxu0
  %v92 = vadd.f32 %v75, %v91
  %93 = vmatmul.bf16.gmra.mxu0 %v48
  %v94 = vpop.f32.mrf.mxu0
  %v95 = vadd.f32 %v75, %v94
  %v96 = vpop.f32.mrf.mxu0
  %97 = vdwg.mxu0
  %v98 = vld [vmem:[%s3] sm:$0xf]
  %v99 = vld [vmem:[%s3 + $0x4] sm:$0xf]
  %v100 = vld [vmem:[%s4] sm:$0x1]
  %v101 = vld [vmem:[%s7] sm:$0x1]
  %v102 = vld [vmem:[%s8] sm:$0x1]
  %v103 = vmax.f32 %v64, 0.0
  %v104 = vmax.f32 %v66, 0.0
  %v105 = vmax.f32 %v69, 0.0
  %v106 = vpack.c.bf16 %v104, %v103
  %v107 = vpack.c.bf16 %v105, %v105
  %v109 = vperm.slane %v100, 0
  %v113 = vunpack.c.l.b16 %v98
  %v114 = vunpack.c.l.b16 %v99
  %v115 = vpack.c.b16 %v114, %v113
  %vm117 = vcmask 130048
  %v119 = vsel %vm117, %v106, 0
  %v122 = vsel %vm117, %v107, 0
  %124 = vmatpush.bf16.msra.mxu0 0
  %125 = vmatpush.bf16.msra.mxu0 0
  %126 = vmatpush.bf16.msra.mxu0 0
  %127 = vmatpush.bf16.msra.mxu0 0
  %128 = vmatpush.bf16.msra.mxu0 0
  %129 = vmatpush.bf16.msra.mxu0 0
  %130 = vmatpush.bf16.msra.mxu0 0
  %131 = vmatpush.bf16.msra.mxu0 %v115
  %132 = vmatmul.bf16.gmra.mxu0 %v119
  %v133 = vpop.f32.mrf.mxu0
  %v134 = vadd.f32 %v109, %v133
  %v135 = vpop.f32.mrf.mxu0
  %v136 = vadd.f32 %v109, %v135
  %137 = vmatmul.bf16.gmra.mxu0 %v122
  %v138 = vpop.f32.mrf.mxu0
  %v139 = vadd.f32 %v109, %v138
  %v140 = vpop.f32.mrf.mxu0
  %141 = vdwg.mxu0
  %v142 = vadd.f32 %v134, %v90
  %v143 = vadd.f32 %v136, %v92
  %v144 = vadd.f32 %v139, %v95
  %vm145 = vcmask 23552
  %v146 = vsel %vm145, %v142, 0.0
  %147 = vadd.xlane.f32.xlu0 %v146
  %v148 = vpop.xlane.xlu0 %147
  %v149 = vsel %vm145, %v143, 0.0
  %150 = vadd.xlane.f32.xlu0 %v149
  %v151 = vpop.xlane.xlu0 %150
  %v152 = vsel %vm145, %v144, 0.0
  %153 = vadd.xlane.f32.xlu0 %v152
  %v154 = vpop.xlane.xlu0 %153
  %v155 = vrcp.pop 3.0
  %v156 = vmul.f32 3.0, %v155
  %v157 = vsub.f32 1.0, %v156
  %v158 = vmul.f32 %v155, %v157
  %v159 = vadd.f32 %v155, %v158
  %vm160 = vweird.f32 %v155
  %v161 = vsel %vm160, %v155, %v159
  %v162 = vmul.f32 %v148, %v161
  %v163 = vmul.f32 %v151, %v161
  %v164 = vmul.f32 %v154, %v161
  %v165 = vsub.f32 %v142, %v162
  %v166 = vsub.f32 %v143, %v163
  %v167 = vsub.f32 %v144, %v164
  %v168 = vmul.f32 %v165, %v165
  %v169 = vmul.f32 %v166, %v166
  %v170 = vmul.f32 %v167, %v167
  %v171 = vsel %vm145, %v168, 0.0
  %172 = vadd.xlane.f32.xlu0 %v171
  %v173 = vpop.xlane.xlu0 %172
  %v174 = vsel %vm145, %v169, 0.0
  %175 = vadd.xlane.f32.xlu0 %v174
  %v176 = vpop.xlane.xlu0 %175
  %v177 = vsel %vm145, %v170, 0.0
  %178 = vadd.xlane.f32.xlu0 %v177
  %v179 = vpop.xlane.xlu0 %178
  %v180 = vmul.f32 %v173, %v161
  %v181 = vmul.f32 %v176, %v161
  %v182 = vmul.f32 %v179, %v161
  %v183 = vadd.f32 %v180, 1e-05
  %v184 = vadd.f32 %v181, 1e-05
  %v185 = vadd.f32 %v182, 1e-05
  %v186 = vrsqrt.pop %v183
  %v187 = vmul.f32 %v186, %v183
  %v188 = vmul.f32 %v187, %v186
  %v189 = vmul.f32 0.5, %v188
  %v190 = vsub.f32 1.5, %v189
  %v191 = vmul.f32 %v186, %v190
  %vm192 = vweird.f32 %v183
  %vm193 = vweird.f32 %v186
  %vm194 = vmor %vm192, %vm193
  %v195 = vsel %vm194, %v186, %v191
  %v196 = vrsqrt.pop %v184
  %v197 = vmul.f32 %v196, %v184
  %v198 = vmul.f32 %v197, %v196
  %v199 = vmul.f32 0.5, %v198
  %v200 = vsub.f32 1.5, %v199
  %v201 = vmul.f32 %v196, %v200
  %vm202 = vweird.f32 %v184
  %vm203 = vweird.f32 %v196
  %vm204 = vmor %vm202, %vm203
  %v205 = vsel %vm204, %v196, %v201
  %v206 = vrsqrt.pop %v185
  %v207 = vmul.f32 %v206, %v185
  %v208 = vmul.f32 %v207, %v206
  %v209 = vmul.f32 0.5, %v208
  %v210 = vsub.f32 1.5, %v209
  %v211 = vmul.f32 %v206, %v210
  %vm212 = vweird.f32 %v185
  %vm213 = vweird.f32 %v206
  %vm214 = vmor %vm212, %vm213
  %v215 = vsel %vm214, %v206, %v211
  %v216 = vmul.f32 %v165, %v195
  %v217 = vmul.f32 %v166, %v205
  %v218 = vmul.f32 %v167, %v215
  %v220 = vperm.slane %v101, 0
  %v222 = vmul.f32 %v216, %v220
  %v223 = vmul.f32 %v217, %v220
  %v224 = vmul.f32 %v218, %v220
  %v226 = vperm.slane %v102, 0
  %v228 = vadd.f32 %v222, %v226
  %v229 = vadd.f32 %v223, %v226
  %v230 = vadd.f32 %v224, %v226
  %231 = vst.msk [vmem:[%s9] sm:$0xff] %vm145, %v228
  %232 = vst.msk [vmem:[%s9 + $0x8] sm:$0xff] %vm145, %v229
  %233 = vst.msk [vmem:[%s9 + $0x10] sm:$0xff] %vm145, %v230
  // Predicated region
  $region38: #{a_call__.2} parent=0 // pred_check
    _
  $region39: #{a_call__.2} parent=0 // pred_check_branch
    %235 = sbr.rel (0) target = $region41
  $region40: #{a_call__.2} parent=0 // pred_region
    _
  $region41: #{a_call__.2} parent=0 // pred_fallthru
    _
  // Predicated region
  $region42: #{a_call__.2} parent=0 // pred_check
    _
  $region43: #{a_call__.2} parent=0 // pred_check_branch
    %237 = sbr.rel (0) target = $region45
  $region44: #{a_call__.2} parent=0 // pred_region
    _
  $region45: #{a_call__.2} parent=0 // pred_fallthru
    _

// kernel: a_call__.3
$region0: #{a_call__.3}
  #allocation0 [shape = 'u32[]', space=smem, size = 0x4, offset = 0x4, fixed_abs, tag = 'smem constant byte address 0x4 - core index']
  #allocation1 [shape = 'u32[72,128]{1,0:T(1,128)}', space=vmem, size = 0x9000, scoped, tag = 'internal scratch']
  #allocation2 [shape = 'f32[2,32]{1,0:T(2,128)}', space=vmem, size = 0x400, scoped, tag = 'scratch operand']
  %s0 = inlined_call_operand.vmem [shape: f32[2,8], index: 0, kind: input, shape index: {}]
  %s1 = inlined_call_operand.vmem [shape: f32[2,1], index: 1, kind: input, shape index: {}]
  %s2 = inlined_call_operand.vmem [shape: f32[2,36], index: 2, kind: input, shape index: {}]
  %s3 = inlined_call_operand.vmem [shape: bf16[8,32], index: 3, kind: input, shape index: {}]
  %s4 = inlined_call_operand.vmem [shape: bf16[1,32], index: 4, kind: input, shape index: {}]
  %s5 = inlined_call_operand.vmem [shape: bf16[36,32], index: 5, kind: input, shape index: {}]
  %s6 = inlined_call_operand.vmem [shape: f32[1,32], index: 6, kind: input, shape index: {}]
  %s7 = inlined_call_operand.vmem [shape: bf16[8,32], index: 7, kind: input, shape index: {}]
  %s8 = inlined_call_operand.vmem [shape: bf16[1,32], index: 8, kind: input, shape index: {}]
  %s9 = inlined_call_operand.vmem [shape: bf16[36,32], index: 9, kind: input, shape index: {}]
  %s10 = inlined_call_operand.vmem [shape: f32[1,32], index: 10, kind: input, shape index: {}]
  %s11 = inlined_call_operand.vmem [shape: bf16[32,32], index: 11, kind: input, shape index: {}]
  %s12 = inlined_call_operand.vmem [shape: f32[1,32], index: 12, kind: input, shape index: {}]
  %s13 = inlined_call_operand.vmem [shape: f32[1,32], index: 13, kind: input, shape index: {}]
  %s14 = inlined_call_operand.vmem [shape: f32[1,32], index: 14, kind: input, shape index: {}]
  %s15 = inlined_call_operand.vmem [shape: bf16[1,32,32], index: 15, kind: input, shape index: {}]
  %s16 = inlined_call_operand.vmem [shape: f32[1,1,32], index: 16, kind: input, shape index: {}]
  %s17 = inlined_call_operand.vmem [shape: bf16[1,32,32], index: 17, kind: input, shape index: {}]
  %s18 = inlined_call_operand.vmem [shape: f32[1,1,32], index: 18, kind: input, shape index: {}]
  %s19 = inlined_call_operand.vmem [shape: bf16[1,32,32], index: 19, kind: input, shape index: {}]
  %s20 = inlined_call_operand.vmem [shape: f32[1,1,32], index: 20, kind: input, shape index: {}]
  %s21 = inlined_call_operand.vmem [shape: f32[1,1,32], index: 21, kind: input, shape index: {}]
  %s22 = inlined_call_operand.vmem [shape: f32[1,1,32], index: 22, kind: input, shape index: {}]
  %s23 = inlined_call_operand.hbm [shape: f32[2,32], index: 23, kind: output, shape index: {}]
  %s24 = sld [smem:[#allocation0]]
  $region137: #{a_call__.3} parent=0
    _
  %s26 = ssub.s32 1, %s24
  %s27 = scalar_select 0, %s26, %s24
  $region1: #{a_call__.3} parent=0
    #allocation3 [shape = 'u8[1024]{0}', space=vmem, size = 0x400, scoped, tag = 'output window, operand 0, single buffered']
    #allocation4 [shape = 's32[2]{0}', space=sflag, size = 0x8, scoped, tag = 'scoped memory for a_call__.3']
    %28 = vsyncpa [#allocation4], 0
    loop: start=0, step=1, limit=4
    $region2: #{a_call__.3} parent=1 // loop_pre_header
      _
    $region3: #{a_call__.3} parent=1 // loop_header
      %s30 = sphi 0, %s34
      %p31 = scmp.ge.s32.totalorder %s30, 4
      %s37 = sphi 0, %s49
      %s38 = sphi 0, %s45
      %s39 = sphi 0, %s37
      %s40 = sphi 0, %s38
      %s41 = sphi 0, %s39
      %s42 = sphi 0, %s40
      %s52 = sphi 0, %s54
      %s55 = sphi 0, %s52
      %s56 = sphi 0, %s55
      %s72 = sphi 0, %s56
      %s78 = sphi 0, %s80
      %s81 = sphi 0, %s78
      %s82 = sphi 0, %s81
      %s98 = sphi 0, %s82
      %s104 = sphi 0, %s106
      %s107 = sphi 0, %s104
      %s108 = sphi 0, %s107
      %s124 = sphi 0, %s108
      %s128 = sphi 0, %s128
      %s130 = sphi 0, %s128
      %s131 = sphi 0, %s130
      %s145 = sphi 0, %s131
      %s149 = sphi 0, %s149
      %s151 = sphi 0, %s149
      %s152 = sphi 0, %s151
      %s166 = sphi 0, %s152
      %s170 = sphi 0, %s170
      %s172 = sphi 0, %s170
      %s173 = sphi 0, %s172
      %s187 = sphi 0, %s173
      %s191 = sphi 0, %s191
      %s193 = sphi 0, %s191
      %s194 = sphi 0, %s193
      %s208 = sphi 0, %s194
      %s212 = sphi 0, %s212
      %s214 = sphi 0, %s212
      %s215 = sphi 0, %s214
      %s229 = sphi 0, %s215
      %s233 = sphi 0, %s233
      %s235 = sphi 0, %s233
      %s236 = sphi 0, %s235
      %s250 = sphi 0, %s236
      %s254 = sphi 0, %s254
      %s256 = sphi 0, %s254
      %s257 = sphi 0, %s256
      %s271 = sphi 0, %s257
      %s275 = sphi 0, %s275
      %s277 = sphi 0, %s275
      %s278 = sphi 0, %s277
      %s292 = sphi 0, %s278
      %s296 = sphi 0, %s296
      %s298 = sphi 0, %s296
      %s299 = sphi 0, %s298
      %s313 = sphi 0, %s299
      %s317 = sphi 0, %s317
      %s319 = sphi 0, %s317
      %s320 = sphi 0, %s319
      %s334 = sphi 0, %s320
      %s338 = sphi 0, %s338
      %s340 = sphi 0, %s338
      %s341 = sphi 0, %s340
      %s355 = sphi 0, %s341
      %s359 = sphi 0, %s359
      %s361 = sphi 0, %s359
      %s362 = sphi 0, %s361
      %s376 = sphi 0, %s362
      %s388 = sphi 0, %s390
      %s391 = sphi 0, %s388
      %s392 = sphi 0, %s391
      %s408 = sphi 0, %s392
      %s420 = sphi 0, %s422
      %s423 = sphi 0, %s420
      %s424 = sphi 0, %s423
      %s440 = sphi 0, %s424
      %s452 = sphi 0, %s454
      %s455 = sphi 0, %s452
      %s456 = sphi 0, %s455
      %s472 = sphi 0, %s456
      %s484 = sphi 0, %s486
      %s487 = sphi 0, %s484
      %s488 = sphi 0, %s487
      %s504 = sphi 0, %s488
      %s516 = sphi 0, %s518
      %s519 = sphi 0, %s516
      %s520 = sphi 0, %s519
      %s536 = sphi 0, %s520
      %s548 = sphi 0, %s550
      %s551 = sphi 0, %s548
      %s552 = sphi 0, %s551
      %s568 = sphi 0, %s552
      %s580 = sphi 0, %s582
      %s583 = sphi 0, %s580
      %s584 = sphi 0, %s583
      %s600 = sphi 0, %s584
      %s612 = sphi 0, %s614
      %s615 = sphi 0, %s612
      %s616 = sphi 0, %s615
      %s632 = sphi 0, %s616
      %s638 = sphi 0, %s640
      %s641 = sphi 0, %s638
      %s642 = sphi 0, %s641
      %s658 = sphi 0, %s642
    $region4: #{a_call__.3} parent=1 // loop_header_branch
      %33 = sbr.rel (%p31) target = $region8
    $region5: #{a_call__.3} parent=1 // loop_body
      %s35 = ssub.s32 %s30, 1
      %s36 = ssub.s32 %s30, 2
      %s43 = sadd.s32 1, %s38
      %p44 = scmp.ge.s32.totalorder %s43, 2
      %s45 = scalar_select %p44, 0, %s43
      %s46 = sadd.s32 1, %s37
      %s47 = scalar_select %p44, %s46, %s37
      %p48 = scmp.ge.s32.totalorder %s47, 1
      %s49 = scalar_select %p48, 0, %s47
      %s50 = ssub.s32 %s37, %s49
      %p51 = scmp.eq.s32.totalorder %s50, 0
      %s53 = sadd.s32 %s52, 1
      %s54 = scalar_select %p51, %s52, %s53
      %p57 = pneg %p51
      %p58 = scmp.eq.s32.totalorder %s30, 1
      %p59 = por %p57, %p58
      %p60 = scmp.ne.s32.totalorder %s52, %s55
      %p61 = scmp.eq.s32.totalorder %s30, 0
      %p62 = por %p60, %p61
      %p63 = scmp.ne.s32.totalorder %s52, %s55
      %p64 = scmp.eq.s32.totalorder %s35, 1
      %p65 = por %p63, %p64
      %p66 = scmp.ne.s32.totalorder %s55, %s56
      %p67 = scmp.eq.s32.totalorder %s35, 0
      %p68 = por %p66, %p67
      %p69 = scmp.ne.s32.totalorder %s55, %s56
      %p70 = scmp.eq.s32.totalorder %s36, 1
      %p71 = por %p69, %p70
      %p73 = scmp.ne.s32.totalorder %s56, %s72
      %p74 = scmp.eq.s32.totalorder %s36, 0
      %p75 = por %p73, %p74
      %s76 = ssub.s32 %s37, %s49
      %p77 = scmp.eq.s32.totalorder %s76, 0
      %s79 = sadd.s32 %s78, 1
      %s80 = scalar_select %p77, %s78, %s79
      %p83 = pneg %p77
      %p84 = scmp.eq.s32.totalorder %s30, 1
      %p85 = por %p83, %p84
      %p86 = scmp.ne.s32.totalorder %s78, %s81
      %p87 = scmp.eq.s32.totalorder %s30, 0
      %p88 = por %p86, %p87
      %p89 = scmp.ne.s32.totalorder %s78, %s81
      %p90 = scmp.eq.s32.totalorder %s35, 1
      %p91 = por %p89, %p90
      %p92 = scmp.ne.s32.totalorder %s81, %s82
      %p93 = scmp.eq.s32.totalorder %s35, 0
      %p94 = por %p92, %p93
      %p95 = scmp.ne.s32.totalorder %s81, %s82
      %p96 = scmp.eq.s32.totalorder %s36, 1
      %p97 = por %p95, %p96
      %p99 = scmp.ne.s32.totalorder %s82, %s98
      %p100 = scmp.eq.s32.totalorder %s36, 0
      %p101 = por %p99, %p100
      %s102 = ssub.s32 %s37, %s49
      %p103 = scmp.eq.s32.totalorder %s102, 0
      %s105 = sadd.s32 %s104, 1
      %s106 = scalar_select %p103, %s104, %s105
      %p109 = pneg %p103
      %p110 = scmp.eq.s32.totalorder %s30, 1
      %p111 = por %p109, %p110
      %p112 = scmp.ne.s32.totalorder %s104, %s107
      %p113 = scmp.eq.s32.totalorder %s30, 0
      %p114 = por %p112, %p113
      %p115 = scmp.ne.s32.totalorder %s104, %s107
      %p116 = scmp.eq.s32.totalorder %s35, 1
      %p117 = por %p115, %p116
      %p118 = scmp.ne.s32.totalorder %s107, %s108
      %p119 = scmp.eq.s32.totalorder %s35, 0
      %p120 = por %p118, %p119
      %p121 = scmp.ne.s32.totalorder %s107, %s108
      %p122 = scmp.eq.s32.totalorder %s36, 1
      %p123 = por %p121, %p122
      %p125 = scmp.ne.s32.totalorder %s108, %s124
      %p126 = scmp.eq.s32.totalorder %s36, 0
      %p127 = por %p125, %p126
      %s129 = sadd.s32 %s128, 1
      %p132 = scmp.eq.s32.totalorder %s30, 1
      %p133 = scmp.ne.s32.totalorder %s128, %s130
      %p134 = scmp.eq.s32.totalorder %s30, 0
      %p135 = por %p133, %p134
      %p136 = scmp.ne.s32.totalorder %s128, %s130
      %p137 = scmp.eq.s32.totalorder %s35, 1
      %p138 = por %p136, %p137
      %p139 = scmp.ne.s32.totalorder %s130, %s131
      %p140 = scmp.eq.s32.totalorder %s35, 0
      %p141 = por %p139, %p140
      %p142 = scmp.ne.s32.totalorder %s130, %s131
      %p143 = scmp.eq.s32.totalorder %s36, 1
      %p144 = por %p142, %p143
      %p146 = scmp.ne.s32.totalorder %s131, %s145
      %p147 = scmp.eq.s32.totalorder %s36, 0
      %p148 = por %p146, %p147
      %s150 = sadd.s32 %s149, 1
      %p153 = scmp.eq.s32.totalorder %s30, 1
      %p154 = scmp.ne.s32.totalorder %s149, %s151
      %p155 = scmp.eq.s32.totalorder %s30, 0
      %p156 = por %p154, %p155
      %p157 = scmp.ne.s32.totalorder %s149, %s151
      %p158 = scmp.eq.s32.totalorder %s35, 1
      %p159 = por %p157, %p158
      %p160 = scmp.ne.s32.totalorder %s151, %s152
      %p161 = scmp.eq.s32.totalorder %s35, 0
      %p162 = por %p160, %p161
      %p163 = scmp.ne.s32.totalorder %s151, %s152
      %p164 = scmp.eq.s32.totalorder %s36, 1
      %p165 = por %p163, %p164
      %p167 = scmp.ne.s32.totalorder %s152, %s166
      %p168 = scmp.eq.s32.totalorder %s36, 0
      %p169 = por %p167, %p168
      %s171 = sadd.s32 %s170, 1
      %p174 = scmp.eq.s32.totalorder %s30, 1
      %p175 = scmp.ne.s32.totalorder %s170, %s172
      %p176 = scmp.eq.s32.totalorder %s30, 0
      %p177 = por %p175, %p176
      %p178 = scmp.ne.s32.totalorder %s170, %s172
      %p179 = scmp.eq.s32.totalorder %s35, 1
      %p180 = por %p178, %p179
      %p181 = scmp.ne.s32.totalorder %s172, %s173
      %p182 = scmp.eq.s32.totalorder %s35, 0
      %p183 = por %p181, %p182
      %p184 = scmp.ne.s32.totalorder %s172, %s173
      %p185 = scmp.eq.s32.totalorder %s36, 1
      %p186 = por %p184, %p185
      %p188 = scmp.ne.s32.totalorder %s173, %s187
      %p189 = scmp.eq.s32.totalorder %s36, 0
      %p190 = por %p188, %p189
      %s192 = sadd.s32 %s191, 1
      %p195 = scmp.eq.s32.totalorder %s30, 1
      %p196 = scmp.ne.s32.totalorder %s191, %s193
      %p197 = scmp.eq.s32.totalorder %s30, 0
      %p198 = por %p196, %p197
      %p199 = scmp.ne.s32.totalorder %s191, %s193
      %p200 = scmp.eq.s32.totalorder %s35, 1
      %p201 = por %p199, %p200
      %p202 = scmp.ne.s32.totalorder %s193, %s194
      %p203 = scmp.eq.s32.totalorder %s35, 0
      %p204 = por %p202, %p203
      %p205 = scmp.ne.s32.totalorder %s193, %s194
      %p206 = scmp.eq.s32.totalorder %s36, 1
      %p207 = por %p205, %p206
      %p209 = scmp.ne.s32.totalorder %s194, %s208
      %p210 = scmp.eq.s32.totalorder %s36, 0
      %p211 = por %p209, %p210
      %s213 = sadd.s32 %s212, 1
      %p216 = scmp.eq.s32.totalorder %s30, 1
      %p217 = scmp.ne.s32.totalorder %s212, %s214
      %p218 = scmp.eq.s32.totalorder %s30, 0
      %p219 = por %p217, %p218
      %p220 = scmp.ne.s32.totalorder %s212, %s214
      %p221 = scmp.eq.s32.totalorder %s35, 1
      %p222 = por %p220, %p221
      %p223 = scmp.ne.s32.totalorder %s214, %s215
      %p224 = scmp.eq.s32.totalorder %s35, 0
      %p225 = por %p223, %p224
      %p226 = scmp.ne.s32.totalorder %s214, %s215
      %p227 = scmp.eq.s32.totalorder %s36, 1
      %p228 = por %p226, %p227
      %p230 = scmp.ne.s32.totalorder %s215, %s229
      %p231 = scmp.eq.s32.totalorder %s36, 0
      %p232 = por %p230, %p231
      %s234 = sadd.s32 %s233, 1
      %p237 = scmp.eq.s32.totalorder %s30, 1
      %p238 = scmp.ne.s32.totalorder %s233, %s235
      %p239 = scmp.eq.s32.totalorder %s30, 0
      %p240 = por %p238, %p239
      %p241 = scmp.ne.s32.totalorder %s233, %s235
      %p242 = scmp.eq.s32.totalorder %s35, 1
      %p243 = por %p241, %p242
      %p244 = scmp.ne.s32.totalorder %s235, %s236
      %p245 = scmp.eq.s32.totalorder %s35, 0
      %p246 = por %p244, %p245
      %p247 = scmp.ne.s32.totalorder %s235, %s236
      %p248 = scmp.eq.s32.totalorder %s36, 1
      %p249 = por %p247, %p248
      %p251 = scmp.ne.s32.totalorder %s236, %s250
      %p252 = scmp.eq.s32.totalorder %s36, 0
      %p253 = por %p251, %p252
      %s255 = sadd.s32 %s254, 1
      %p258 = scmp.eq.s32.totalorder %s30, 1
      %p259 = scmp.ne.s32.totalorder %s254, %s256
      %p260 = scmp.eq.s32.totalorder %s30, 0
      %p261 = por %p259, %p260
      %p262 = scmp.ne.s32.totalorder %s254, %s256
      %p263 = scmp.eq.s32.totalorder %s35, 1
      %p264 = por %p262, %p263
      %p265 = scmp.ne.s32.totalorder %s256, %s257
      %p266 = scmp.eq.s32.totalorder %s35, 0
      %p267 = por %p265, %p266
      %p268 = scmp.ne.s32.totalorder %s256, %s257
      %p269 = scmp.eq.s32.totalorder %s36, 1
      %p270 = por %p268, %p269
      %p272 = scmp.ne.s32.totalorder %s257, %s271
      %p273 = scmp.eq.s32.totalorder %s36, 0
      %p274 = por %p272, %p273
      %s276 = sadd.s32 %s275, 1
      %p279 = scmp.eq.s32.totalorder %s30, 1
      %p280 = scmp.ne.s32.totalorder %s275, %s277
      %p281 = scmp.eq.s32.totalorder %s30, 0
      %p282 = por %p280, %p281
      %p283 = scmp.ne.s32.totalorder %s275, %s277
      %p284 = scmp.eq.s32.totalorder %s35, 1
      %p285 = por %p283, %p284
      %p286 = scmp.ne.s32.totalorder %s277, %s278
      %p287 = scmp.eq.s32.totalorder %s35, 0
      %p288 = por %p286, %p287
      %p289 = scmp.ne.s32.totalorder %s277, %s278
      %p290 = scmp.eq.s32.totalorder %s36, 1
      %p291 = por %p289, %p290
      %p293 = scmp.ne.s32.totalorder %s278, %s292
      %p294 = scmp.eq.s32.totalorder %s36, 0
      %p295 = por %p293, %p294
      %s297 = sadd.s32 %s296, 1
      %p300 = scmp.eq.s32.totalorder %s30, 1
      %p301 = scmp.ne.s32.totalorder %s296, %s298
      %p302 = scmp.eq.s32.totalorder %s30, 0
      %p303 = por %p301, %p302
      %p304 = scmp.ne.s32.totalorder %s296, %s298
      %p305 = scmp.eq.s32.totalorder %s35, 1
      %p306 = por %p304, %p305
      %p307 = scmp.ne.s32.totalorder %s298, %s299
      %p308 = scmp.eq.s32.totalorder %s35, 0
      %p309 = por %p307, %p308
      %p310 = scmp.ne.s32.totalorder %s298, %s299
      %p311 = scmp.eq.s32.totalorder %s36, 1
      %p312 = por %p310, %p311
      %p314 = scmp.ne.s32.totalorder %s299, %s313
      %p315 = scmp.eq.s32.totalorder %s36, 0
      %p316 = por %p314, %p315
      %s318 = sadd.s32 %s317, 1
      %p321 = scmp.eq.s32.totalorder %s30, 1
      %p322 = scmp.ne.s32.totalorder %s317, %s319
      %p323 = scmp.eq.s32.totalorder %s30, 0
      %p324 = por %p322, %p323
      %p325 = scmp.ne.s32.totalorder %s317, %s319
      %p326 = scmp.eq.s32.totalorder %s35, 1
      %p327 = por %p325, %p326
      %p328 = scmp.ne.s32.totalorder %s319, %s320
      %p329 = scmp.eq.s32.totalorder %s35, 0
      %p330 = por %p328, %p329
      %p331 = scmp.ne.s32.totalorder %s319, %s320
      %p332 = scmp.eq.s32.totalorder %s36, 1
      %p333 = por %p331, %p332
      %p335 = scmp.ne.s32.totalorder %s320, %s334
      %p336 = scmp.eq.s32.totalorder %s36, 0
      %p337 = por %p335, %p336
      %s339 = sadd.s32 %s338, 1
      %p342 = scmp.eq.s32.totalorder %s30, 1
      %p343 = scmp.ne.s32.totalorder %s338, %s340
      %p344 = scmp.eq.s32.totalorder %s30, 0
      %p345 = por %p343, %p344
      %p346 = scmp.ne.s32.totalorder %s338, %s340
      %p347 = scmp.eq.s32.totalorder %s35, 1
      %p348 = por %p346, %p347
      %p349 = scmp.ne.s32.totalorder %s340, %s341
      %p350 = scmp.eq.s32.totalorder %s35, 0
      %p351 = por %p349, %p350
      %p352 = scmp.ne.s32.totalorder %s340, %s341
      %p353 = scmp.eq.s32.totalorder %s36, 1
      %p354 = por %p352, %p353
      %p356 = scmp.ne.s32.totalorder %s341, %s355
      %p357 = scmp.eq.s32.totalorder %s36, 0
      %p358 = por %p356, %p357
      %s360 = sadd.s32 %s359, 1
      %p363 = scmp.eq.s32.totalorder %s30, 1
      %p364 = scmp.ne.s32.totalorder %s359, %s361
      %p365 = scmp.eq.s32.totalorder %s30, 0
      %p366 = por %p364, %p365
      %p367 = scmp.ne.s32.totalorder %s359, %s361
      %p368 = scmp.eq.s32.totalorder %s35, 1
      %p369 = por %p367, %p368
      %p370 = scmp.ne.s32.totalorder %s361, %s362
      %p371 = scmp.eq.s32.totalorder %s35, 0
      %p372 = por %p370, %p371
      %p373 = scmp.ne.s32.totalorder %s361, %s362
      %p374 = scmp.eq.s32.totalorder %s36, 1
      %p375 = por %p373, %p374
      %p377 = scmp.ne.s32.totalorder %s362, %s376
      %p378 = scmp.eq.s32.totalorder %s36, 0
      %p379 = por %p377, %p378
      %s380 = ssub.s32 %s38, 1
      %p381 = scmp.gt.s32.totalorder %s380, 0
      %s382 = scalar_select %p381, %s380, 0
      %s383 = ssub.s32 %s45, 1
      %p384 = scmp.gt.s32.totalorder %s383, 0
      %s385 = scalar_select %p384, %s383, 0
      %s386 = ssub.s32 %s382, %s385
      %p387 = scmp.eq.s32.totalorder %s386, 0
      %s389 = sadd.s32 %s388, 1
      %s390 = scalar_select %p387, %s388, %s389
      %p393 = pneg %p387
      %p394 = scmp.eq.s32.totalorder %s30, 1
      %p395 = por %p393, %p394
      %p396 = scmp.ne.s32.totalorder %s388, %s391
      %p397 = scmp.eq.s32.totalorder %s30, 0
      %p398 = por %p396, %p397
      %p399 = scmp.ne.s32.totalorder %s388, %s391
      %p400 = scmp.eq.s32.totalorder %s35, 1
      %p401 = por %p399, %p400
      %p402 = scmp.ne.s32.totalorder %s391, %s392
      %p403 = scmp.eq.s32.totalorder %s35, 0
      %p404 = por %p402, %p403
      %p405 = scmp.ne.s32.totalorder %s391, %s392
      %p406 = scmp.eq.s32.totalorder %s36, 1
      %p407 = por %p405, %p406
      %p409 = scmp.ne.s32.totalorder %s392, %s408
      %p410 = scmp.eq.s32.totalorder %s36, 0
      %p411 = por %p409, %p410
      %s412 = ssub.s32 %s38, 1
      %p413 = scmp.gt.s32.totalorder %s412, 0
      %s414 = scalar_select %p413, %s412, 0
      %s415 = ssub.s32 %s45, 1
      %p416 = scmp.gt.s32.totalorder %s415, 0
      %s417 = scalar_select %p416, %s415, 0
      %s418 = ssub.s32 %s414, %s417
      %p419 = scmp.eq.s32.totalorder %s418, 0
      %s421 = sadd.s32 %s420, 1
      %s422 = scalar_select %p419, %s420, %s421
      %p425 = pneg %p419
      %p426 = scmp.eq.s32.totalorder %s30, 1
      %p427 = por %p425, %p426
      %p428 = scmp.ne.s32.totalorder %s420, %s423
      %p429 = scmp.eq.s32.totalorder %s30, 0
      %p430 = por %p428, %p429
      %p431 = scmp.ne.s32.totalorder %s420, %s423
      %p432 = scmp.eq.s32.totalorder %s35, 1
      %p433 = por %p431, %p432
      %p434 = scmp.ne.s32.totalorder %s423, %s424
      %p435 = scmp.eq.s32.totalorder %s35, 0
      %p436 = por %p434, %p435
      %p437 = scmp.ne.s32.totalorder %s423, %s424
      %p438 = scmp.eq.s32.totalorder %s36, 1
      %p439 = por %p437, %p438
      %p441 = scmp.ne.s32.totalorder %s424, %s440
      %p442 = scmp.eq.s32.totalorder %s36, 0
      %p443 = por %p441, %p442
      %s444 = ssub.s32 %s38, 1
      %p445 = scmp.gt.s32.totalorder %s444, 0
      %s446 = scalar_select %p445, %s444, 0
      %s447 = ssub.s32 %s45, 1
      %p448 = scmp.gt.s32.totalorder %s447, 0
      %s449 = scalar_select %p448, %s447, 0
      %s450 = ssub.s32 %s446, %s449
      %p451 = scmp.eq.s32.totalorder %s450, 0
      %s453 = sadd.s32 %s452, 1
      %s454 = scalar_select %p451, %s452, %s453
      %p457 = pneg %p451
      %p458 = scmp.eq.s32.totalorder %s30, 1
      %p459 = por %p457, %p458
      %p460 = scmp.ne.s32.totalorder %s452, %s455
      %p461 = scmp.eq.s32.totalorder %s30, 0
      %p462 = por %p460, %p461
      %p463 = scmp.ne.s32.totalorder %s452, %s455
      %p464 = scmp.eq.s32.totalorder %s35, 1
      %p465 = por %p463, %p464
      %p466 = scmp.ne.s32.totalorder %s455, %s456
      %p467 = scmp.eq.s32.totalorder %s35, 0
      %p468 = por %p466, %p467
      %p469 = scmp.ne.s32.totalorder %s455, %s456
      %p470 = scmp.eq.s32.totalorder %s36, 1
      %p471 = por %p469, %p470
      %p473 = scmp.ne.s32.totalorder %s456, %s472
      %p474 = scmp.eq.s32.totalorder %s36, 0
      %p475 = por %p473, %p474
      %s476 = ssub.s32 %s38, 1
      %p477 = scmp.gt.s32.totalorder %s476, 0
      %s478 = scalar_select %p477, %s476, 0
      %s479 = ssub.s32 %s45, 1
      %p480 = scmp.gt.s32.totalorder %s479, 0
      %s481 = scalar_select %p480, %s479, 0
      %s482 = ssub.s32 %s478, %s481
      %p483 = scmp.eq.s32.totalorder %s482, 0
      %s485 = sadd.s32 %s484, 1
      %s486 = scalar_select %p483, %s484, %s485
      %p489 = pneg %p483
      %p490 = scmp.eq.s32.totalorder %s30, 1
      %p491 = por %p489, %p490
      %p492 = scmp.ne.s32.totalorder %s484, %s487
      %p493 = scmp.eq.s32.totalorder %s30, 0
      %p494 = por %p492, %p493
      %p495 = scmp.ne.s32.totalorder %s484, %s487
      %p496 = scmp.eq.s32.totalorder %s35, 1
      %p497 = por %p495, %p496
      %p498 = scmp.ne.s32.totalorder %s487, %s488
      %p499 = scmp.eq.s32.totalorder %s35, 0
      %p500 = por %p498, %p499
      %p501 = scmp.ne.s32.totalorder %s487, %s488
      %p502 = scmp.eq.s32.totalorder %s36, 1
      %p503 = por %p501, %p502
      %p505 = scmp.ne.s32.totalorder %s488, %s504
      %p506 = scmp.eq.s32.totalorder %s36, 0
      %p507 = por %p505, %p506
      %s508 = ssub.s32 %s38, 1
      %p509 = scmp.gt.s32.totalorder %s508, 0
      %s510 = scalar_select %p509, %s508, 0
      %s511 = ssub.s32 %s45, 1
      %p512 = scmp.gt.s32.totalorder %s511, 0
      %s513 = scalar_select %p512, %s511, 0
      %s514 = ssub.s32 %s510, %s513
      %p515 = scmp.eq.s32.totalorder %s514, 0
      %s517 = sadd.s32 %s516, 1
      %s518 = scalar_select %p515, %s516, %s517
      %p521 = pneg %p515
      %p522 = scmp.eq.s32.totalorder %s30, 1
      %p523 = por %p521, %p522
      %p524 = scmp.ne.s32.totalorder %s516, %s519
      %p525 = scmp.eq.s32.totalorder %s30, 0
      %p526 = por %p524, %p525
      %p527 = scmp.ne.s32.totalorder %s516, %s519
      %p528 = scmp.eq.s32.totalorder %s35, 1
      %p529 = por %p527, %p528
      %p530 = scmp.ne.s32.totalorder %s519, %s520
      %p531 = scmp.eq.s32.totalorder %s35, 0
      %p532 = por %p530, %p531
      %p533 = scmp.ne.s32.totalorder %s519, %s520
      %p534 = scmp.eq.s32.totalorder %s36, 1
      %p535 = por %p533, %p534
      %p537 = scmp.ne.s32.totalorder %s520, %s536
      %p538 = scmp.eq.s32.totalorder %s36, 0
      %p539 = por %p537, %p538
      %s540 = ssub.s32 %s38, 1
      %p541 = scmp.gt.s32.totalorder %s540, 0
      %s542 = scalar_select %p541, %s540, 0
      %s543 = ssub.s32 %s45, 1
      %p544 = scmp.gt.s32.totalorder %s543, 0
      %s545 = scalar_select %p544, %s543, 0
      %s546 = ssub.s32 %s542, %s545
      %p547 = scmp.eq.s32.totalorder %s546, 0
      %s549 = sadd.s32 %s548, 1
      %s550 = scalar_select %p547, %s548, %s549
      %p553 = pneg %p547
      %p554 = scmp.eq.s32.totalorder %s30, 1
      %p555 = por %p553, %p554
      %p556 = scmp.ne.s32.totalorder %s548, %s551
      %p557 = scmp.eq.s32.totalorder %s30, 0
      %p558 = por %p556, %p557
      %p559 = scmp.ne.s32.totalorder %s548, %s551
      %p560 = scmp.eq.s32.totalorder %s35, 1
      %p561 = por %p559, %p560
      %p562 = scmp.ne.s32.totalorder %s551, %s552
      %p563 = scmp.eq.s32.totalorder %s35, 0
      %p564 = por %p562, %p563
      %p565 = scmp.ne.s32.totalorder %s551, %s552
      %p566 = scmp.eq.s32.totalorder %s36, 1
      %p567 = por %p565, %p566
      %p569 = scmp.ne.s32.totalorder %s552, %s568
      %p570 = scmp.eq.s32.totalorder %s36, 0
      %p571 = por %p569, %p570
      %s572 = ssub.s32 %s38, 1
      %p573 = scmp.gt.s32.totalorder %s572, 0
      %s574 = scalar_select %p573, %s572, 0
      %s575 = ssub.s32 %s45, 1
      %p576 = scmp.gt.s32.totalorder %s575, 0
      %s577 = scalar_select %p576, %s575, 0
      %s578 = ssub.s32 %s574, %s577
      %p579 = scmp.eq.s32.totalorder %s578, 0
      %s581 = sadd.s32 %s580, 1
      %s582 = scalar_select %p579, %s580, %s581
      %p585 = pneg %p579
      %p586 = scmp.eq.s32.totalorder %s30, 1
      %p587 = por %p585, %p586
      %p588 = scmp.ne.s32.totalorder %s580, %s583
      %p589 = scmp.eq.s32.totalorder %s30, 0
      %p590 = por %p588, %p589
      %p591 = scmp.ne.s32.totalorder %s580, %s583
      %p592 = scmp.eq.s32.totalorder %s35, 1
      %p593 = por %p591, %p592
      %p594 = scmp.ne.s32.totalorder %s583, %s584
      %p595 = scmp.eq.s32.totalorder %s35, 0
      %p596 = por %p594, %p595
      %p597 = scmp.ne.s32.totalorder %s583, %s584
      %p598 = scmp.eq.s32.totalorder %s36, 1
      %p599 = por %p597, %p598
      %p601 = scmp.ne.s32.totalorder %s584, %s600
      %p602 = scmp.eq.s32.totalorder %s36, 0
      %p603 = por %p601, %p602
      %s604 = ssub.s32 %s38, 1
      %p605 = scmp.gt.s32.totalorder %s604, 0
      %s606 = scalar_select %p605, %s604, 0
      %s607 = ssub.s32 %s45, 1
      %p608 = scmp.gt.s32.totalorder %s607, 0
      %s609 = scalar_select %p608, %s607, 0
      %s610 = ssub.s32 %s606, %s609
      %p611 = scmp.eq.s32.totalorder %s610, 0
      %s613 = sadd.s32 %s612, 1
      %s614 = scalar_select %p611, %s612, %s613
      %p617 = pneg %p611
      %p618 = scmp.eq.s32.totalorder %s30, 1
      %p619 = por %p617, %p618
      %p620 = scmp.ne.s32.totalorder %s612, %s615
      %p621 = scmp.eq.s32.totalorder %s30, 0
      %p622 = por %p620, %p621
      %p623 = scmp.ne.s32.totalorder %s612, %s615
      %p624 = scmp.eq.s32.totalorder %s35, 1
      %p625 = por %p623, %p624
      %p626 = scmp.ne.s32.totalorder %s615, %s616
      %p627 = scmp.eq.s32.totalorder %s35, 0
      %p628 = por %p626, %p627
      %p629 = scmp.ne.s32.totalorder %s615, %s616
      %p630 = scmp.eq.s32.totalorder %s36, 1
      %p631 = por %p629, %p630
      %p633 = scmp.ne.s32.totalorder %s616, %s632
      %p634 = scmp.eq.s32.totalorder %s36, 0
      %p635 = por %p633, %p634
      %s636 = ssub.s32 %s37, %s49
      %p637 = scmp.eq.s32.totalorder %s636, 0
      %s639 = sadd.s32 %s638, 1
      %s640 = scalar_select %p637, %s638, %s639
      %p643 = pneg %p637
      %p644 = scmp.eq.s32.totalorder %s30, 1
      %p645 = por %p643, %p644
      %p646 = scmp.ne.s32.totalorder %s638, %s641
      %p647 = scmp.eq.s32.totalorder %s30, 0
      %p648 = por %p646, %p647
      %p649 = scmp.ne.s32.totalorder %s638, %s641
      %p650 = scmp.eq.s32.totalorder %s35, 1
      %p651 = por %p649, %p650
      %p652 = scmp.ne.s32.totalorder %s641, %s642
      %p653 = scmp.eq.s32.totalorder %s35, 0
      %p654 = por %p652, %p653
      %p655 = scmp.ne.s32.totalorder %s641, %s642
      %p656 = scmp.eq.s32.totalorder %s36, 1
      %p657 = por %p655, %p656
      %p659 = scmp.ne.s32.totalorder %s642, %s658
      %p660 = scmp.eq.s32.totalorder %s36, 0
      %p661 = por %p659, %p660
      %p662 = scmp.le.s32.totalorder 1, %s30
      %p663 = scmp.lt.s32.totalorder %s30, 3
      %p664 = pnand %p662, %p663
      %p665 = pneg %p664
      // Predicated region
      $region9: #{a_call__.3} parent=5 // pred_check
        _
      $region10: #{a_call__.3} parent=5 // pred_check_branch
        %667 = sbr.rel (%p664) target = $region12
      $region11: #{a_call__.3} parent=5 // pred_region
        %s668 = ssub.s32 %s30, 1
        // Predicated region
        $region13: #{a_call__.3} parent=11 // pred_check
          %p669 = pneg %p68
        $region14: #{a_call__.3} parent=11 // pred_check_branch
          %671 = sbr.rel (%p669) target = $region16
        $region15: #{a_call__.3} parent=11 // pred_region
          %p672 = scmp.lt.s32.totalorder %s39, 0
          %s673 = scalar_select %p672, %s39, 0
          %s674 = smul.addr %s673, 2
          %s675 = scalar_lea.vmem %s0, %s674
        $region16: #{a_call__.3} parent=11 // pred_fallthru
          _
        // Predicated region
        $region17: #{a_call__.3} parent=11 // pred_check
          %p676 = pneg %p94
        $region18: #{a_call__.3} parent=11 // pred_check_branch
          %678 = sbr.rel (%p676) target = $region20
        $region19: #{a_call__.3} parent=11 // pred_region
          %p679 = scmp.lt.s32.totalorder %s39, 0
          %s680 = scalar_select %p679, %s39, 0
          %s681 = smul.addr %s680, 2
          %s682 = scalar_lea.vmem %s1, %s681
        $region20: #{a_call__.3} parent=11 // pred_fallthru
          _
        // Predicated region
        $region21: #{a_call__.3} parent=11 // pred_check
          %p683 = pneg %p120
        $region22: #{a_call__.3} parent=11 // pred_check_branch
          %685 = sbr.rel (%p683) target = $region24
        $region23: #{a_call__.3} parent=11 // pred_region
          %p686 = scmp.lt.s32.totalorder %s39, 0
          %s687 = scalar_select %p686, %s39, 0
          %s688 = smul.addr %s687, 2
          %s689 = scalar_lea.vmem %s2, %s688
        $region24: #{a_call__.3} parent=11 // pred_fallthru
          _
        // Predicated region
        $region25: #{a_call__.3} parent=11 // pred_check
          %p690 = pneg %p141
        $region26: #{a_call__.3} parent=11 // pred_check_branch
          %692 = sbr.rel (%p690) target = $region28
        $region27: #{a_call__.3} parent=11 // pred_region
          _
        $region28: #{a_call__.3} parent=11 // pred_fallthru
          _
        // Predicated region
        $region29: #{a_call__.3} parent=11 // pred_check
          %p693 = pneg %p162
        $region30: #{a_call__.3} parent=11 // pred_check_branch
          %695 = sbr.rel (%p693) target = $region32
        $region31: #{a_call__.3} parent=11 // pred_region
          _
        $region32: #{a_call__.3} parent=11 // pred_fallthru
          _
        // Predicated region
        $region33: #{a_call__.3} parent=11 // pred_check
          %p696 = pneg %p183
        $region34: #{a_call__.3} parent=11 // pred_check_branch
          %698 = sbr.rel (%p696) target = $region36
        $region35: #{a_call__.3} parent=11 // pred_region
          _
        $region36: #{a_call__.3} parent=11 // pred_fallthru
          _
        // Predicated region
        $region37: #{a_call__.3} parent=11 // pred_check
          %p699 = pneg %p204
        $region38: #{a_call__.3} parent=11 // pred_check_branch
          %701 = sbr.rel (%p699) target = $region40
        $region39: #{a_call__.3} parent=11 // pred_region
          _
        $region40: #{a_call__.3} parent=11 // pred_fallthru
          _
        // Predicated region
        $region41: #{a_call__.3} parent=11 // pred_check
          %p702 = pneg %p225
        $region42: #{a_call__.3} parent=11 // pred_check_branch
          %704 = sbr.rel (%p702) target = $region44
        $region43: #{a_call__.3} parent=11 // pred_region
          _
        $region44: #{a_call__.3} parent=11 // pred_fallthru
          _
        // Predicated region
        $region45: #{a_call__.3} parent=11 // pred_check
          %p705 = pneg %p246
        $region46: #{a_call__.3} parent=11 // pred_check_branch
          %707 = sbr.rel (%p705) target = $region48
        $region47: #{a_call__.3} parent=11 // pred_region
          _
        $region48: #{a_call__.3} parent=11 // pred_fallthru
          _
        // Predicated region
        $region49: #{a_call__.3} parent=11 // pred_check
          %p708 = pneg %p267
        $region50: #{a_call__.3} parent=11 // pred_check_branch
          %710 = sbr.rel (%p708) target = $region52
        $region51: #{a_call__.3} parent=11 // pred_region
          _
        $region52: #{a_call__.3} parent=11 // pred_fallthru
          _
        // Predicated region
        $region53: #{a_call__.3} parent=11 // pred_check
          %p711 = pneg %p288
        $region54: #{a_call__.3} parent=11 // pred_check_branch
          %713 = sbr.rel (%p711) target = $region56
        $region55: #{a_call__.3} parent=11 // pred_region
          _
        $region56: #{a_call__.3} parent=11 // pred_fallthru
          _
        // Predicated region
        $region57: #{a_call__.3} parent=11 // pred_check
          %p714 = pneg %p309
        $region58: #{a_call__.3} parent=11 // pred_check_branch
          %716 = sbr.rel (%p714) target = $region60
        $region59: #{a_call__.3} parent=11 // pred_region
          _
        $region60: #{a_call__.3} parent=11 // pred_fallthru
          _
        // Predicated region
        $region61: #{a_call__.3} parent=11 // pred_check
          %p717 = pneg %p330
        $region62: #{a_call__.3} parent=11 // pred_check_branch
          %719 = sbr.rel (%p717) target = $region64
        $region63: #{a_call__.3} parent=11 // pred_region
          _
        $region64: #{a_call__.3} parent=11 // pred_fallthru
          _
        // Predicated region
        $region65: #{a_call__.3} parent=11 // pred_check
          %p720 = pneg %p351
        $region66: #{a_call__.3} parent=11 // pred_check_branch
          %722 = sbr.rel (%p720) target = $region68
        $region67: #{a_call__.3} parent=11 // pred_region
          _
        $region68: #{a_call__.3} parent=11 // pred_fallthru
          _
        // Predicated region
        $region69: #{a_call__.3} parent=11 // pred_check
          %p723 = pneg %p372
        $region70: #{a_call__.3} parent=11 // pred_check_branch
          %725 = sbr.rel (%p723) target = $region72
        $region71: #{a_call__.3} parent=11 // pred_region
          _
        $region72: #{a_call__.3} parent=11 // pred_fallthru
          _
      $region12: #{a_call__.3} parent=5 // pred_fallthru
        _
      %p726 = scmp.lt.s32.totalorder %s30, 2
      // Predicated region
      $region73: #{a_call__.3} parent=5 // pred_check
        %p727 = pneg %p726
      $region74: #{a_call__.3} parent=5 // pred_check_branch
        %729 = sbr.rel (%p727) target = $region76
      $region75: #{a_call__.3} parent=5 // pred_region
        // Predicated region
        $region77: #{a_call__.3} parent=75 // pred_check
          %p730 = pneg %p398
        $region78: #{a_call__.3} parent=75 // pred_check_branch
          %732 = sbr.rel (%p730) target = $region80
        $region79: #{a_call__.3} parent=75 // pred_region
          %s733 = ssub.s32 %s38, 1
          %p734 = scmp.gt.s32.totalorder %s733, 0
          %s735 = scalar_select %p734, %s733, 0
          %p736 = scmp.lt.s32.totalorder %s735, 0
          %s737 = scalar_select %p736, %s735, 0
          %s738 = smul.addr %s737, 4
          %s739 = smul.addr %s738, 4
          %s740 = scalar_lea.vmem %s15, %s739
          %s741 = ssub.s32 %s38, 1
          %p742 = scmp.gt.s32.totalorder %s741, 0
          %s743 = scalar_select %p742, %s741, 0
        $region80: #{a_call__.3} parent=75 // pred_fallthru
          _
        // Predicated region
        $region81: #{a_call__.3} parent=75 // pred_check
          %p744 = pneg %p430
        $region82: #{a_call__.3} parent=75 // pred_check_branch
          %746 = sbr.rel (%p744) target = $region84
        $region83: #{a_call__.3} parent=75 // pred_region
          %s747 = ssub.s32 %s38, 1
          %p748 = scmp.gt.s32.totalorder %s747, 0
          %s749 = scalar_select %p748, %s747, 0
          %p750 = scmp.lt.s32.totalorder %s749, 0
          %s751 = scalar_select %p750, %s749, 0
          %s752 = scalar_lea.vmem %s16, %s751
          %s753 = ssub.s32 %s38, 1
          %p754 = scmp.gt.s32.totalorder %s753, 0
          %s755 = scalar_select %p754, %s753, 0
        $region84: #{a_call__.3} parent=75 // pred_fallthru
          _
        // Predicated region
        $region85: #{a_call__.3} parent=75 // pred_check
          %p756 = pneg %p462
        $region86: #{a_call__.3} parent=75 // pred_check_branch
          %758 = sbr.rel (%p756) target = $region88
        $region87: #{a_call__.3} parent=75 // pred_region
          %s759 = ssub.s32 %s38, 1
          %p760 = scmp.gt.s32.totalorder %s759, 0
          %s761 = scalar_select %p760, %s759, 0
          %p762 = scmp.lt.s32.totalorder %s761, 0
          %s763 = scalar_select %p762, %s761, 0
          %s764 = smul.addr %s763, 4
          %s765 = smul.addr %s764, 4
          %s766 = scalar_lea.vmem %s17, %s765
          %s767 = ssub.s32 %s38, 1
          %p768 = scmp.gt.s32.totalorder %s767, 0
          %s769 = scalar_select %p768, %s767, 0
        $region88: #{a_call__.3} parent=75 // pred_fallthru
          _
        // Predicated region
        $region89: #{a_call__.3} parent=75 // pred_check
          %p770 = pneg %p494
        $region90: #{a_call__.3} parent=75 // pred_check_branch
          %772 = sbr.rel (%p770) target = $region92
        $region91: #{a_call__.3} parent=75 // pred_region
          %s773 = ssub.s32 %s38, 1
          %p774 = scmp.gt.s32.totalorder %s773, 0
          %s775 = scalar_select %p774, %s773, 0
          %p776 = scmp.lt.s32.totalorder %s775, 0
          %s777 = scalar_select %p776, %s775, 0
          %s778 = scalar_lea.vmem %s18, %s777
          %s779 = ssub.s32 %s38, 1
          %p780 = scmp.gt.s32.totalorder %s779, 0
          %s781 = scalar_select %p780, %s779, 0
        $region92: #{a_call__.3} parent=75 // pred_fallthru
          _
        // Predicated region
        $region93: #{a_call__.3} parent=75 // pred_check
          %p782 = pneg %p526
        $region94: #{a_call__.3} parent=75 // pred_check_branch
          %784 = sbr.rel (%p782) target = $region96
        $region95: #{a_call__.3} parent=75 // pred_region
          %s785 = ssub.s32 %s38, 1
          %p786 = scmp.gt.s32.totalorder %s785, 0
          %s787 = scalar_select %p786, %s785, 0
          %p788 = scmp.lt.s32.totalorder %s787, 0
          %s789 = scalar_select %p788, %s787, 0
          %s790 = smul.addr %s789, 4
          %s791 = smul.addr %s790, 4
          %s792 = scalar_lea.vmem %s19, %s791
          %s793 = ssub.s32 %s38, 1
          %p794 = scmp.gt.s32.totalorder %s793, 0
          %s795 = scalar_select %p794, %s793, 0
        $region96: #{a_call__.3} parent=75 // pred_fallthru
          _
        // Predicated region
        $region97: #{a_call__.3} parent=75 // pred_check
          %p796 = pneg %p558
        $region98: #{a_call__.3} parent=75 // pred_check_branch
          %798 = sbr.rel (%p796) target = $region100
        $region99: #{a_call__.3} parent=75 // pred_region
          %s799 = ssub.s32 %s38, 1
          %p800 = scmp.gt.s32.totalorder %s799, 0
          %s801 = scalar_select %p800, %s799, 0
          %p802 = scmp.lt.s32.totalorder %s801, 0
          %s803 = scalar_select %p802, %s801, 0
          %s804 = scalar_lea.vmem %s20, %s803
          %s805 = ssub.s32 %s38, 1
          %p806 = scmp.gt.s32.totalorder %s805, 0
          %s807 = scalar_select %p806, %s805, 0
        $region100: #{a_call__.3} parent=75 // pred_fallthru
          _
        // Predicated region
        $region101: #{a_call__.3} parent=75 // pred_check
          %p808 = pneg %p590
        $region102: #{a_call__.3} parent=75 // pred_check_branch
          %810 = sbr.rel (%p808) target = $region104
        $region103: #{a_call__.3} parent=75 // pred_region
          %s811 = ssub.s32 %s38, 1
          %p812 = scmp.gt.s32.totalorder %s811, 0
          %s813 = scalar_select %p812, %s811, 0
          %p814 = scmp.lt.s32.totalorder %s813, 0
          %s815 = scalar_select %p814, %s813, 0
          %s816 = scalar_lea.vmem %s21, %s815
          %s817 = ssub.s32 %s38, 1
          %p818 = scmp.gt.s32.totalorder %s817, 0
          %s819 = scalar_select %p818, %s817, 0
        $region104: #{a_call__.3} parent=75 // pred_fallthru
          _
        // Predicated region
        $region105: #{a_call__.3} parent=75 // pred_check
          %p820 = pneg %p622
        $region106: #{a_call__.3} parent=75 // pred_check_branch
          %822 = sbr.rel (%p820) target = $region108
        $region107: #{a_call__.3} parent=75 // pred_region
          %s823 = ssub.s32 %s38, 1
          %p824 = scmp.gt.s32.totalorder %s823, 0
          %s825 = scalar_select %p824, %s823, 0
          %p826 = scmp.lt.s32.totalorder %s825, 0
          %s827 = scalar_select %p826, %s825, 0
          %s828 = scalar_lea.vmem %s22, %s827
          %s829 = ssub.s32 %s38, 1
          %p830 = scmp.gt.s32.totalorder %s829, 0
          %s831 = scalar_select %p830, %s829, 0
        $region108: #{a_call__.3} parent=75 // pred_fallthru
          _
      $region76: #{a_call__.3} parent=5 // pred_fallthru
        _
      %p832 = scmp.le.s32.totalorder 1, %s30
      %p833 = scmp.lt.s32.totalorder %s30, 3
      %p834 = pnand %p832, %p833
      %p835 = pneg %p834
      // Predicated region
      $region109: #{a_call__.3} parent=5 // pred_check
        _
      $region110: #{a_call__.3} parent=5 // pred_check_branch
        %837 = sbr.rel (%p834) target = $region112
      $region111: #{a_call__.3} parent=5 // pred_region
        %s838 = ssub.s32 %s30, 1
        %p839 = scmp.lt.s32.totalorder %s39, 0
        %s840 = scalar_select %p839, %s39, 0
        %s841 = smul.addr %s840, 2
        %s842 = scalar_lea.vmem %s0, %s841
        %p843 = pneg %p68
        %p844 = pneg %p65
        %p845 = scmp.lt.s32.totalorder %s39, 0
        %s846 = scalar_select %p845, %s39, 0
        %s847 = smul.addr %s846, 2
        %s848 = scalar_lea.vmem %s1, %s847
        %p849 = pneg %p94
        %p850 = pneg %p91
        %p851 = scmp.lt.s32.totalorder %s39, 0
        %s852 = scalar_select %p851, %s39, 0
        %s853 = smul.addr %s852, 2
        %s854 = scalar_lea.vmem %s2, %s853
        %p855 = pneg %p120
        %p856 = pneg %p117
        %p857 = pneg %p141
        %p858 = pneg %p138
        %p859 = pneg %p162
        %p860 = pneg %p159
        %p861 = pneg %p183
        %p862 = pneg %p180
        %p863 = pneg %p204
        %p864 = pneg %p201
        %p865 = pneg %p225
        %p866 = pneg %p222
        %p867 = pneg %p246
        %p868 = pneg %p243
        %p869 = pneg %p267
        %p870 = pneg %p264
        %p871 = pneg %p288
        %p872 = pneg %p285
        %p873 = pneg %p309
        %p874 = pneg %p306
        %p875 = pneg %p330
        %p876 = pneg %p327
        %p877 = pneg %p351
        %p878 = pneg %p348
        %p879 = pneg %p372
        %p880 = pneg %p369
        %s881 = ssub.s32 %s40, 1
        %p882 = scmp.gt.s32.totalorder %s881, 0
        %s883 = scalar_select %p882, %s881, 0
        %p884 = scmp.lt.s32.totalorder %s883, 0
        %s885 = scalar_select %p884, %s883, 0
        %s886 = smul.addr %s885, 4
        %s887 = smul.addr %s886, 4
        %s888 = scalar_lea.vmem %s15, %s887
        %p889 = pneg %p404
        %p890 = pneg %p401
        %s891 = ssub.s32 %s40, 1
        %p892 = scmp.gt.s32.totalorder %s891, 0
        %s893 = scalar_select %p892, %s891, 0
        %p894 = scmp.lt.s32.totalorder %s893, 0
        %s895 = scalar_select %p894, %s893, 0
        %s896 = scalar_lea.vmem %s16, %s895
        %p897 = pneg %p436
        %p898 = pneg %p433
        %s899 = ssub.s32 %s40, 1
        %p900 = scmp.gt.s32.totalorder %s899, 0
        %s901 = scalar_select %p900, %s899, 0
        %p902 = scmp.lt.s32.totalorder %s901, 0
        %s903 = scalar_select %p902, %s901, 0
        %s904 = smul.addr %s903, 4
        %s905 = smul.addr %s904, 4
        %s906 = scalar_lea.vmem %s17, %s905
        %p907 = pneg %p468
        %p908 = pneg %p465
        %s909 = ssub.s32 %s40, 1
        %p910 = scmp.gt.s32.totalorder %s909, 0
        %s911 = scalar_select %p910, %s909, 0
        %p912 = scmp.lt.s32.totalorder %s911, 0
        %s913 = scalar_select %p912, %s911, 0
        %s914 = scalar_lea.vmem %s18, %s913
        %p915 = pneg %p500
        %p916 = pneg %p497
        %s917 = ssub.s32 %s40, 1
        %p918 = scmp.gt.s32.totalorder %s917, 0
        %s919 = scalar_select %p918, %s917, 0
        %p920 = scmp.lt.s32.totalorder %s919, 0
        %s921 = scalar_select %p920, %s919, 0
        %s922 = smul.addr %s921, 4
        %s923 = smul.addr %s922, 4
        %s924 = scalar_lea.vmem %s19, %s923
        %p925 = pneg %p532
        %p926 = pneg %p529
        %s927 = ssub.s32 %s40, 1
        %p928 = scmp.gt.s32.totalorder %s927, 0
        %s929 = scalar_select %p928, %s927, 0
        %p930 = scmp.lt.s32.totalorder %s929, 0
        %s931 = scalar_select %p930, %s929, 0
        %s932 = scalar_lea.vmem %s20, %s931
        %p933 = pneg %p564
        %p934 = pneg %p561
        %s935 = ssub.s32 %s40, 1
        %p936 = scmp.gt.s32.totalorder %s935, 0
        %s937 = scalar_select %p936, %s935, 0
        %p938 = scmp.lt.s32.totalorder %s937, 0
        %s939 = scalar_select %p938, %s937, 0
        %s940 = scalar_lea.vmem %s21, %s939
        %p941 = pneg %p596
        %p942 = pneg %p593
        %s943 = ssub.s32 %s40, 1
        %p944 = scmp.gt.s32.totalorder %s943, 0
        %s945 = scalar_select %p944, %s943, 0
        %p946 = scmp.lt.s32.totalorder %s945, 0
        %s947 = scalar_select %p946, %s945, 0
        %s948 = scalar_lea.vmem %s22, %s947
        %p949 = pneg %p628
        %p950 = pneg %p625
        %p951 = pneg %p654
        %p952 = pneg %p651
        %p953 = scmp.lt.s32.totalorder %s39, 0
        %s954 = scalar_select %p953, %s39, 0
        %s955 = smul.addr %s954, 2
        %s956 = scalar_lea.vmem %s0, %s955
        %p957 = scmp.lt.s32.totalorder %s39, 0
        %s958 = scalar_select %p957, %s39, 0
        %s959 = smul.addr %s958, 2
        %s960 = scalar_lea.vmem %s1, %s959
        %p961 = scmp.lt.s32.totalorder %s39, 0
        %s962 = scalar_select %p961, %s39, 0
        %s963 = smul.addr %s962, 2
        %s964 = scalar_lea.vmem %s2, %s963
        %s965 = ssub.s32 %s40, 1
        %p966 = scmp.gt.s32.totalorder %s965, 0
        %s967 = scalar_select %p966, %s965, 0
        %p968 = scmp.lt.s32.totalorder %s967, 0
        %s969 = scalar_select %p968, %s967, 0
        %s970 = smul.addr %s969, 4
        %s971 = smul.addr %s970, 4
        %s972 = scalar_lea.vmem %s15, %s971
        %s973 = ssub.s32 %s40, 1
        %p974 = scmp.gt.s32.totalorder %s973, 0
        %s975 = scalar_select %p974, %s973, 0
        %s976 = ssub.s32 %s40, 1
        %p977 = scmp.gt.s32.totalorder %s976, 0
        %s978 = scalar_select %p977, %s976, 0
        %p979 = scmp.lt.s32.totalorder %s978, 0
        %s980 = scalar_select %p979, %s978, 0
        %s981 = scalar_lea.vmem %s16, %s980
        %s982 = ssub.s32 %s40, 1
        %p983 = scmp.gt.s32.totalorder %s982, 0
        %s984 = scalar_select %p983, %s982, 0
        %s985 = ssub.s32 %s40, 1
        %p986 = scmp.gt.s32.totalorder %s985, 0
        %s987 = scalar_select %p986, %s985, 0
        %p988 = scmp.lt.s32.totalorder %s987, 0
        %s989 = scalar_select %p988, %s987, 0
        %s990 = smul.addr %s989, 4
        %s991 = smul.addr %s990, 4
        %s992 = scalar_lea.vmem %s17, %s991
        %s993 = ssub.s32 %s40, 1
        %p994 = scmp.gt.s32.totalorder %s993, 0
        %s995 = scalar_select %p994, %s993, 0
        %s996 = ssub.s32 %s40, 1
        %p997 = scmp.gt.s32.totalorder %s996, 0
        %s998 = scalar_select %p997, %s996, 0
        %p999 = scmp.lt.s32.totalorder %s998, 0
        %s1000 = scalar_select %p999, %s998, 0
        %s1001 = scalar_lea.vmem %s18, %s1000
        %s1002 = ssub.s32 %s40, 1
        %p1003 = scmp.gt.s32.totalorder %s1002, 0
        %s1004 = scalar_select %p1003, %s1002, 0
        %s1005 = ssub.s32 %s40, 1
        %p1006 = scmp.gt.s32.totalorder %s1005, 0
        %s1007 = scalar_select %p1006, %s1005, 0
        %p1008 = scmp.lt.s32.totalorder %s1007, 0
        %s1009 = scalar_select %p1008, %s1007, 0
        %s1010 = smul.addr %s1009, 4
        %s1011 = smul.addr %s1010, 4
        %s1012 = scalar_lea.vmem %s19, %s1011
        %s1013 = ssub.s32 %s40, 1
        %p1014 = scmp.gt.s32.totalorder %s1013, 0
        %s1015 = scalar_select %p1014, %s1013, 0
        %s1016 = ssub.s32 %s40, 1
        %p1017 = scmp.gt.s32.totalorder %s1016, 0
        %s1018 = scalar_select %p1017, %s1016, 0
        %p1019 = scmp.lt.s32.totalorder %s1018, 0
        %s1020 = scalar_select %p1019, %s1018, 0
        %s1021 = scalar_lea.vmem %s20, %s1020
        %s1022 = ssub.s32 %s40, 1
        %p1023 = scmp.gt.s32.totalorder %s1022, 0
        %s1024 = scalar_select %p1023, %s1022, 0
        %s1025 = ssub.s32 %s40, 1
        %p1026 = scmp.gt.s32.totalorder %s1025, 0
        %s1027 = scalar_select %p1026, %s1025, 0
        %p1028 = scmp.lt.s32.totalorder %s1027, 0
        %s1029 = scalar_select %p1028, %s1027, 0
        %s1030 = scalar_lea.vmem %s21, %s1029
        %s1031 = ssub.s32 %s40, 1
        %p1032 = scmp.gt.s32.totalorder %s1031, 0
        %s1033 = scalar_select %p1032, %s1031, 0
        %s1034 = ssub.s32 %s40, 1
        %p1035 = scmp.gt.s32.totalorder %s1034, 0
        %s1036 = scalar_select %p1035, %s1034, 0
        %p1037 = scmp.lt.s32.totalorder %s1036, 0
        %s1038 = scalar_select %p1037, %s1036, 0
        %s1039 = scalar_lea.vmem %s22, %s1038
        %s1040 = ssub.s32 %s40, 1
        %p1041 = scmp.gt.s32.totalorder %s1040, 0
        %s1042 = scalar_select %p1041, %s1040, 0
        %p1044 = scmp.eq.s32.totalorder %s40, 0
        // Predicated region
        $region113: #{a_call__.3} parent=111 // pred_check
          %p1045 = pneg %p1044
        $region114: #{a_call__.3} parent=111 // pred_check_branch
          %1047 = sbr.rel (%p1045) target = $region116
        $region115: #{a_call__.3} parent=111 // pred_region
          %v1048 = vld [vmem:[%s956] sm:$0x3]
          %v1049 = vpack.c.bf16 %v1048, %v1048
          %v1050 = vld [vmem:[%s964] sm:$0x3]
          %v1051 = vpack.c.bf16 %v1050, %v1050
          %v1052 = vld [vmem:[%s960] sm:$0x3]
          %v1053 = vld [vmem:[%s3] sm:$0xf]
          %v1054 = vld [vmem:[%s5] sm:$0xf]
          %v1055 = vld [vmem:[%s5 + $0x4] sm:$0xf]
          %v1056 = vld [vmem:[%s5 + $0x8] sm:$0xf]
          %v1057 = vld [vmem:[%s5 + $0xc] sm:$0xf]
          %v1058 = vld [vmem:[%s5 + $0x10] sm:$0x3]
          %v1064 = vunpack.c.l.b16 %v1054
          %v1065 = vunpack.c.l.b16 %v1055
          %v1066 = vunpack.c.l.b16 %v1056
          %v1067 = vunpack.c.l.b16 %v1057
          %v1068 = vunpack.c.l.b16 %v1058
          %v1069 = vpack.c.b16 %v1065, %v1064
          %v1070 = vpack.c.b16 %v1067, %v1066
          %v1071 = vpack.c.b16 %v1068, %v1068
          %vm1074 = vcmask 293888
          %v1076 = vsel %vm1074, %v1051, 0
          %vm1078 = vcmask 1041408
          %v1080 = vsel %vm1078, %v1071, 0
          %1082 = vmatpush.bf16.msra.mxu0 0
          %1083 = vmatpush.bf16.msra.mxu0 0
          %1084 = vmatpush.bf16.msra.mxu0 0
          %1085 = vmatpush.bf16.msra.mxu0 0
          %1086 = vmatpush.bf16.msra.mxu0 0
          %1087 = vmatpush.bf16.msra.mxu0 %v1080
          %1088 = vmatpush.bf16.msra.mxu0 %v1070
          %1089 = vmatpush.bf16.msra.mxu0 %v1069
          %1090 = vmatmul.bf16.gmra.mxu0 %v1076
          %v1091 = vpop.f32.mrf.mxu0
          %v1092 = vadd.f32 0.0, %v1091
          %v1093 = vpop.f32.mrf.mxu0
          %1094 = vdwg.mxu0
          %vm1095 = vcmask 64512
          %v1097 = vsel %vm1095, %v1049, 0
          %vm1099 = vcmask 1043456
          %v1101 = vsel %vm1099, %v1053, 0
          %1103 = vmatpush.bf16.msra.mxu0 0
          %1104 = vmatpush.bf16.msra.mxu0 0
          %1105 = vmatpush.bf16.msra.mxu0 0
          %1106 = vmatpush.bf16.msra.mxu0 0
          %1107 = vmatpush.bf16.msra.mxu0 0
          %1108 = vmatpush.bf16.msra.mxu0 0
          %1109 = vmatpush.bf16.msra.mxu0 0
          %1110 = vmatpush.bf16.msra.mxu0 %v1101
          %1111 = vmatmul.bf16.gmra.mxu0 %v1097
          %v1112 = vpop.f32.mrf.mxu0
          %v1113 = vadd.f32 %v1092, %v1112
          %v1114 = vpop.f32.mrf.mxu0
          %1115 = vdwg.mxu0
          %v1116 = vld [vmem:[%s4] sm:$0x1]
          %v1117 = vunpack.c.l.bf16 %v1116
          %1119 = vset.pattern.permute.xlu0 0
          %1120 = vperm.xlu0 %1119, %v1052
          %v1121 = vpop.permute.xlu0 %1120
          %v1123 = vperm.slane %v1117, 0
          %v1124 = vmul.f32 %v1121, %v1123
          %v1125 = vadd.f32 %v1113, %v1124
          %v1126 = vld [vmem:[%s6] sm:$0x1]
          %v1128 = vperm.slane %v1126, 0
          %v1130 = vadd.f32 %v1125, %v1128
          %v1131 = vld [vmem:[%s7] sm:$0xf]
          %v1132 = vld [vmem:[%s9] sm:$0xf]
          %v1133 = vld [vmem:[%s9 + $0x4] sm:$0xf]
          %v1134 = vld [vmem:[%s9 + $0x8] sm:$0xf]
          %v1135 = vld [vmem:[%s9 + $0xc] sm:$0xf]
          %v1136 = vld [vmem:[%s9 + $0x10] sm:$0x3]
          %v1142 = vunpack.c.l.b16 %v1132
          %v1143 = vunpack.c.l.b16 %v1133
          %v1144 = vunpack.c.l.b16 %v1134
          %v1145 = vunpack.c.l.b16 %v1135
          %v1146 = vunpack.c.l.b16 %v1136
          %v1147 = vpack.c.b16 %v1143, %v1142
          %v1148 = vpack.c.b16 %v1145, %v1144
          %v1149 = vpack.c.b16 %v1146, %v1146
          %v1153 = vsel %vm1078, %v1149, 0
          %1155 = vmatpush.bf16.msra.mxu0 0
          %1156 = vmatpush.bf16.msra.mxu0 0
          %1157 = vmatpush.bf16.msra.mxu0 0
          %1158 = vmatpush.bf16.msra.mxu0 0
          %1159 = vmatpush.bf16.msra.mxu0 0
          %1160 = vmatpush.bf16.msra.mxu0 %v1153
          %1161 = vmatpush.bf16.msra.mxu0 %v1148
          %1162 = vmatpush.bf16.msra.mxu0 %v1147
          %1163 = vmatmul.bf16.gmra.mxu0 %v1076
          %v1164 = vpop.f32.mrf.mxu0
          %v1165 = vadd.f32 0.0, %v1164
          %v1166 = vpop.f32.mrf.mxu0
          %1167 = vdwg.mxu0
          %v1169 = vsel %vm1099, %v1131, 0
          %1171 = vmatpush.bf16.msra.mxu0 0
          %1172 = vmatpush.bf16.msra.mxu0 0
          %1173 = vmatpush.bf16.msra.mxu0 0
          %1174 = vmatpush.bf16.msra.mxu0 0
          %1175 = vmatpush.bf16.msra.mxu0 0
          %1176 = vmatpush.bf16.msra.mxu0 0
          %1177 = vmatpush.bf16.msra.mxu0 0
          %1178 = vmatpush.bf16.msra.mxu0 %v1169
          %1179 = vmatmul.bf16.gmra.mxu0 %v1097
          %v1180 = vpop.f32.mrf.mxu0
          %v1181 = vadd.f32 %v1165, %v1180
          %v1182 = vpop.f32.mrf.mxu0
          %1183 = vdwg.mxu0
          %v1184 = vld [vmem:[%s8] sm:$0x1]
          %v1185 = vunpack.c.l.bf16 %v1184
          %v1186 = vperm.slane %v1185, 0
          %v1187 = vmul.f32 %v1121, %v1186
          %v1188 = vadd.f32 %v1181, %v1187
          %v1189 = vld [vmem:[%s10] sm:$0x1]
          %v1191 = vperm.slane %v1189, 0
          %v1193 = vadd.f32 %v1188, %v1191
          %v1194 = vld [vmem:[%s11] sm:$0xf]
          %v1195 = vld [vmem:[%s11 + $0x4] sm:$0xf]
          %v1196 = vld [vmem:[%s11 + $0x8] sm:$0xf]
          %v1197 = vld [vmem:[%s11 + $0xc] sm:$0xf]
          %v1198 = vld [vmem:[%s12] sm:$0x1]
          %v1199 = vld [vmem:[%s13] sm:$0x1]
          %v1200 = vld [vmem:[%s14] sm:$0x1]
          %v1201 = vmax.f32 %v1130, 0.0
          %v1202 = vpack.c.bf16 %v1201, %v1201
          %v1204 = vperm.slane %v1198, 0
          %v1210 = vunpack.c.l.b16 %v1194
          %v1211 = vunpack.c.l.b16 %v1195
          %v1212 = vunpack.c.l.b16 %v1196
          %v1213 = vunpack.c.l.b16 %v1197
          %v1214 = vpack.c.b16 %v1211, %v1210
          %v1215 = vpack.c.b16 %v1213, %v1212
          %vm1218 = vcmask 261120
          %v1220 = vsel %vm1218, %v1202, 0
          %1222 = vmatpush.bf16.msra.mxu0 0
          %1223 = vmatpush.bf16.msra.mxu0 0
          %1224 = vmatpush.bf16.msra.mxu0 0
          %1225 = vmatpush.bf16.msra.mxu0 0
          %1226 = vmatpush.bf16.msra.mxu0 0
          %1227 = vmatpush.bf16.msra.mxu0 0
          %1228 = vmatpush.bf16.msra.mxu0 %v1215
          %1229 = vmatpush.bf16.msra.mxu0 %v1214
          %1230 = vmatmul.bf16.gmra.mxu0 %v1220
          %v1231 = vpop.f32.mrf.mxu0
          %v1232 = vadd.f32 %v1204, %v1231
          %v1233 = vpop.f32.mrf.mxu0
          %1234 = vdwg.mxu0
          %v1235 = vadd.f32 %v1232, %v1193
          %vm1236 = vcmask 254976
          %v1237 = vsel %vm1236, %v1235, 0.0
          %1238 = vadd.xlane.f32.xlu0 %v1237
          %v1239 = vpop.xlane.xlu0 %1238
          %v1240 = vrcp.pop 32.0
          %v1241 = vmul.f32 32.0, %v1240
          %v1242 = vsub.f32 1.0, %v1241
          %v1243 = vmul.f32 %v1240, %v1242
          %v1244 = vadd.f32 %v1240, %v1243
          %vm1245 = vweird.f32 %v1240
          %v1246 = vsel %vm1245, %v1240, %v1244
          %v1247 = vmul.f32 %v1239, %v1246
          %v1248 = vsub.f32 %v1235, %v1247
          %v1249 = vmul.f32 %v1248, %v1248
          %v1250 = vsel %vm1236, %v1249, 0.0
          %1251 = vadd.xlane.f32.xlu0 %v1250
          %v1252 = vpop.xlane.xlu0 %1251
          %v1253 = vmul.f32 %v1252, %v1246
          %v1254 = vadd.f32 %v1253, 1e-05
          %v1255 = vrsqrt.pop %v1254
          %v1256 = vmul.f32 %v1255, %v1254
          %v1257 = vmul.f32 %v1256, %v1255
          %v1258 = vmul.f32 0.5, %v1257
          %v1259 = vsub.f32 1.5, %v1258
          %v1260 = vmul.f32 %v1255, %v1259
          %vm1261 = vweird.f32 %v1254
          %vm1262 = vweird.f32 %v1255
          %vm1263 = vmor %vm1261, %vm1262
          %v1264 = vsel %vm1263, %v1255, %v1260
          %v1265 = vmul.f32 %v1248, %v1264
          %v1267 = vperm.slane %v1199, 0
          %v1269 = vmul.f32 %v1265, %v1267
          %v1271 = vperm.slane %v1200, 0
          %v1273 = vadd.f32 %v1269, %v1271
          %1274 = vst.msk [vmem:[#allocation2] sm:$0x3] %vm1236, %v1273
        $region116: #{a_call__.3} parent=111 // pred_fallthru
          _
        %p1275 = scmp.gt.s32.totalorder %s40, 0
        // Predicated region
        $region117: #{a_call__.3} parent=111 // pred_check
          %p1276 = pneg %p1275
        $region118: #{a_call__.3} parent=111 // pred_check_branch
          %1278 = sbr.rel (%p1276) target = $region120
        $region119: #{a_call__.3} parent=111 // pred_region
          %v1279 = vld [vmem:[#allocation2] sm:$0x3]
          %v1280 = vpack.c.bf16 %v1279, %v1279
          %v1281 = vld [vmem:[%s972] sm:$0xf]
          %v1282 = vld [vmem:[%s972 + $0x4] sm:$0xf]
          %v1283 = vld [vmem:[%s972 + $0x8] sm:$0xf]
          %v1284 = vld [vmem:[%s972 + $0xc] sm:$0xf]
          %v1285 = vld [vmem:[%s981] sm:$0x1]
          %v1287 = vperm.slane %v1285, 0
          %v1293 = vunpack.c.l.b16 %v1281
          %v1294 = vunpack.c.l.b16 %v1282
          %v1295 = vunpack.c.l.b16 %v1283
          %v1296 = vunpack.c.l.b16 %v1284
          %v1297 = vpack.c.b16 %v1294, %v1293
          %v1298 = vpack.c.b16 %v1296, %v1295
          %vm1301 = vcmask 261120
          %v1303 = vsel %vm1301, %v1280, 0
          %1305 = vmatpush.bf16.msra.mxu0 0
          %1306 = vmatpush.bf16.msra.mxu0 0
          %1307 = vmatpush.bf16.msra.mxu0 0
          %1308 = vmatpush.bf16.msra.mxu0 0
          %1309 = vmatpush.bf16.msra.mxu0 0
          %1310 = vmatpush.bf16.msra.mxu0 0
          %1311 = vmatpush.bf16.msra.mxu0 %v1298
          %1312 = vmatpush.bf16.msra.mxu0 %v1297
          %1313 = vmatmul.bf16.gmra.mxu0 %v1303
          %v1314 = vpop.f32.mrf.mxu0
          %v1315 = vadd.f32 %v1287, %v1314
          %v1316 = vpop.f32.mrf.mxu0
          %1317 = vdwg.mxu0
          %v1318 = vld [vmem:[%s1012] sm:$0xf]
          %v1319 = vld [vmem:[%s1012 + $0x4] sm:$0xf]
          %v1320 = vld [vmem:[%s1012 + $0x8] sm:$0xf]
          %v1321 = vld [vmem:[%s1012 + $0xc] sm:$0xf]
          %v1322 = vld [vmem:[%s1021] sm:$0x1]
          %v1324 = vperm.slane %v1322, 0
          %v1330 = vunpack.c.l.b16 %v1318
          %v1331 = vunpack.c.l.b16 %v1319
          %v1332 = vunpack.c.l.b16 %v1320
          %v1333 = vunpack.c.l.b16 %v1321
          %v1334 = vpack.c.b16 %v1331, %v1330
          %v1335 = vpack.c.b16 %v1333, %v1332
          %1338 = vmatpush.bf16.msra.mxu0 0
          %1339 = vmatpush.bf16.msra.mxu0 0
          %1340 = vmatpush.bf16.msra.mxu0 0
          %1341 = vmatpush.bf16.msra.mxu0 0
          %1342 = vmatpush.bf16.msra.mxu0 0
          %1343 = vmatpush.bf16.msra.mxu0 0
          %1344 = vmatpush.bf16.msra.mxu0 %v1335
          %1345 = vmatpush.bf16.msra.mxu0 %v1334
          %1346 = vmatmul.bf16.gmra.mxu0 %v1303
          %v1347 = vpop.f32.mrf.mxu0
          %v1348 = vadd.f32 %v1324, %v1347
          %v1349 = vpop.f32.mrf.mxu0
          %1350 = vdwg.mxu0
          %v1351 = vld [vmem:[%s992] sm:$0xf]
          %v1352 = vld [vmem:[%s992 + $0x4] sm:$0xf]
          %v1353 = vld [vmem:[%s992 + $0x8] sm:$0xf]
          %v1354 = vld [vmem:[%s992 + $0xc] sm:$0xf]
          %v1355 = vld [vmem:[%s1001] sm:$0x1]
          %v1356 = vld [vmem:[%s1030] sm:$0x1]
          %v1357 = vld [vmem:[%s1039] sm:$0x1]
          %v1358 = vmax.f32 %v1315, 0.0
          %v1359 = vpack.c.bf16 %v1358, %v1358
          %v1361 = vperm.slane %v1355, 0
          %v1367 = vunpack.c.l.b16 %v1351
          %v1368 = vunpack.c.l.b16 %v1352
          %v1369 = vunpack.c.l.b16 %v1353
          %v1370 = vunpack.c.l.b16 %v1354
          %v1371 = vpack.c.b16 %v1368, %v1367
          %v1372 = vpack.c.b16 %v1370, %v1369
          %v1376 = vsel %vm1301, %v1359, 0
          %1378 = vmatpush.bf16.msra.mxu0 0
          %1379 = vmatpush.bf16.msra.mxu0 0
          %1380 = vmatpush.bf16.msra.mxu0 0
          %1381 = vmatpush.bf16.msra.mxu0 0
          %1382 = vmatpush.bf16.msra.mxu0 0
          %1383 = vmatpush.bf16.msra.mxu0 0
          %1384 = vmatpush.bf16.msra.mxu0 %v1372
          %1385 = vmatpush.bf16.msra.mxu0 %v1371
          %1386 = vmatmul.bf16.gmra.mxu0 %v1376
          %v1387 = vpop.f32.mrf.mxu0
          %v1388 = vadd.f32 %v1361, %v1387
          %v1389 = vpop.f32.mrf.mxu0
          %1390 = vdwg.mxu0
          %v1391 = vadd.f32 %v1388, %v1348
          %vm1392 = vcmask 254976
          %v1393 = vsel %vm1392, %v1391, 0.0
          %1394 = vadd.xlane.f32.xlu0 %v1393
          %v1395 = vpop.xlane.xlu0 %1394
          %v1396 = vrcp.pop 32.0
          %v1397 = vmul.f32 32.0, %v1396
          %v1398 = vsub.f32 1.0, %v1397
          %v1399 = vmul.f32 %v1396, %v1398
          %v1400 = vadd.f32 %v1396, %v1399
          %vm1401 = vweird.f32 %v1396
          %v1402 = vsel %vm1401, %v1396, %v1400
          %v1403 = vmul.f32 %v1395, %v1402
          %v1404 = vsub.f32 %v1391, %v1403
          %v1405 = vmul.f32 %v1404, %v1404
          %v1406 = vsel %vm1392, %v1405, 0.0
          %1407 = vadd.xlane.f32.xlu0 %v1406
          %v1408 = vpop.xlane.xlu0 %1407
          %v1409 = vmul.f32 %v1408, %v1402
          %v1410 = vadd.f32 %v1409, 1e-05
          %v1411 = vrsqrt.pop %v1410
          %v1412 = vmul.f32 %v1411, %v1410
          %v1413 = vmul.f32 %v1412, %v1411
          %v1414 = vmul.f32 0.5, %v1413
          %v1415 = vsub.f32 1.5, %v1414
          %v1416 = vmul.f32 %v1411, %v1415
          %vm1417 = vweird.f32 %v1410
          %vm1418 = vweird.f32 %v1411
          %vm1419 = vmor %vm1417, %vm1418
          %v1420 = vsel %vm1419, %v1411, %v1416
          %v1421 = vmul.f32 %v1404, %v1420
          %v1423 = vperm.slane %v1356, 0
          %v1425 = vmul.f32 %v1421, %v1423
          %v1427 = vperm.slane %v1357, 0
          %v1429 = vadd.f32 %v1425, %v1427
          %1430 = vst.msk [vmem:[#allocation2] sm:$0x3] %vm1392, %v1429
        $region120: #{a_call__.3} parent=111 // pred_fallthru
          _
        %p1431 = scmp.eq.s32.totalorder %s40, 1
        // Predicated region
        $region121: #{a_call__.3} parent=111 // pred_check
          %p1432 = pneg %p1431
        $region122: #{a_call__.3} parent=111 // pred_check_branch
          %1434 = sbr.rel (%p1432) target = $region124
        $region123: #{a_call__.3} parent=111 // pred_region
          %v1435 = vld [vmem:[#allocation2] sm:$0x3]
          %vm1436 = vcmask 254976
          %1437 = vst.msk [vmem:[#allocation3] sm:$0x3] %vm1436, %v1435
        $region124: #{a_call__.3} parent=111 // pred_fallthru
          _
        // Predicated region
        $region125: #{a_call__.3} parent=111 // pred_check
          %p1438 = pneg %p651
        $region126: #{a_call__.3} parent=111 // pred_check_branch
          %1440 = sbr.rel (%p1438) target = $region128
        $region127: #{a_call__.3} parent=111 // pred_region
          %1442 = vsyncadd [#allocation4], 0
          %s1443 = smul.addr %s39, 2
          %s1444 = scalar_lea.hbm %s23, %s1443
          %s1446 = sshll.u32 [#allocation3], 4
          %s1447 = int_to_ptr.vmem [resolvable:$true] %s1446
          %s1448 = sshll.u32 %s1444, 4
          %s1449 = int_to_ptr.hbm [resolvable:$true] %s1448
          %1451 = dma.vmem_to_hbm [thread:$0]  %s1447, 32, %s1449, [#allocation4]
        $region128: #{a_call__.3} parent=111 // pred_fallthru
          _
        // Predicated region
        $region129: #{a_call__.3} parent=111 // pred_check
          %p1452 = pneg %p651
        $region130: #{a_call__.3} parent=111 // pred_check_branch
          %1454 = sbr.rel (%p1452) target = $region132
        $region131: #{a_call__.3} parent=111 // pred_region
          %1456 = dma.done [#allocation4], 32
        $region132: #{a_call__.3} parent=111 // pred_fallthru
          _
      $region112: #{a_call__.3} parent=5 // pred_fallthru
        _
      %p1457 = scmp.le.s32.totalorder 2, %s30
      // Predicated region
      $region133: #{a_call__.3} parent=5 // pred_check
        %p1458 = pneg %p1457
      $region134: #{a_call__.3} parent=5 // pred_check_branch
        %1460 = sbr.rel (%p1458) target = $region136
      $region135: #{a_call__.3} parent=5 // pred_region
        %s1461 = ssub.s32 %s30, 2
      $region136: #{a_call__.3} parent=5 // pred_fallthru
        _
    $region6: #{a_call__.3} parent=1 // loop_footer
      %s34 = sadd.s32 1, %s30
    $region7: #{a_call__.3} parent=1 // loop_footer_branch
      %29 = sbr.rel target = $region3
    $region8: #{a_call__.3} parent=1 // loop_exit
      _
    %1462 = vsyncpa [#allocation4], 1
    %s1463 = scalar_lea.sflag [#allocation4], 1
    %1464 = vsyncpa %s1463, 1

</llo_original>
